<compile_context>
chip_gen: v6e
topology: v6e:2x2x1
jax: 0.10.0
libtpu: 0.0.40
codegen_flags: <defaults>
</compile_context>

<pallas_src>
import numpy as np
import jax
import jax.numpy as jnp
from jax.experimental import pallas as pl
from jax.experimental.pallas import tpu as pltpu


# ------------------------------ fused kernel -------------------------------

def _lenet2_kernel(a_ref, b1_ref, b2w_ref, b2b_ref, w1r_ref, b1f_ref,
                   w2_ref, b2f_ref, out_ref):
    f32 = jnp.float32

    # ---- conv1 + bias + pool-reorder: ONE banded matmul --------------------
    # A[r, kh*28+w] = img[oh(r)+kh, w] (even oh rows first), A[:,140] = 1.
    # B1 columns: 0..119 -> (c, ow even), 120..239 -> (c, ow odd); row 140 = bias.
    c1 = jnp.dot(a_ref[...], b1_ref[...], preferred_element_type=f32)   # (24, 240)

    # ---- maxpool2D1 (2x2) + relu1: pure elementwise lane/sublane-half maxes
    cm = jnp.maximum(c1[:, :120], c1[:, 120:])                          # (24, 120)
    p1 = jnp.maximum(cm[:12, :], cm[12:, :])                            # (12, 120)
    p1 = jnp.maximum(p1, 0.0)                                           # relu1

    # ---- conv2 (10 -> 20, k=5): 5 banded matmuls, uninterrupted accumulate -
    # B2[kh][c*12+iw, col] band over kw; cols 0..79 -> (o, ow2 even), 80..159 odd.
    m2 = jnp.dot(p1[0:8, :], b2w_ref[0], preferred_element_type=f32)    # (8, 160)
    for kh in range(1, 5):
        m2 = m2 + jnp.dot(p1[kh:kh + 8, :], b2w_ref[kh],
                          preferred_element_type=f32)
    m2 = m2 + b2b_ref[...]                                              # conv2 bias
    # TODO(synk): nn.Dropout2d() is identity in eval mode; stochastic channel
    # drop (training mode) is not modelled.

    # ---- maxpool2D2 column-pair max + relu2 (relu commutes with row max) ---
    q = jnp.maximum(jnp.maximum(m2[:, :80], m2[:, 80:]), 0.0)           # (8, 80)

    # ---- fc1 + relu3: pool2 row-pair max fused into 4 per-row matmuls ------
    # (x.view(1,-1) is folded into the host layout of w1r.)
    h = b1f_ref[...]                                                    # (1, 50)
    for ph in range(4):
        row = jnp.maximum(q[2 * ph:2 * ph + 1, :],
                          q[2 * ph + 1:2 * ph + 2, :])                  # (1, 80)
        h = h + jnp.dot(row, w1r_ref[ph], preferred_element_type=f32)
    h = jnp.maximum(h, 0.0)
    # TODO(synk): nn.Dropout() is identity in eval mode (training-mode mask
    # not modelled).

    # ---- fc2 + log_softmax(dim=1), lane-dense padded to 128 lanes ----------
    y = jnp.dot(h, w2_ref[...], preferred_element_type=f32) + b2f_ref[...]  # (1,128)
    m = jnp.max(y, axis=-1, keepdims=True)
    s = y - m
    tot = jnp.sum(jnp.exp(s), axis=-1, keepdims=True)
    out_ref[...] = s - jnp.log(tot)                                     # (1, 128)


# -------------------------- host-side weight packing ------------------------

def pack_params(params):
    """Fold conv bands, pooling reorders, biases and view(1,-1) into weights."""
    f32 = np.float32
    w1 = np.asarray(params["conv1_w"], f32)   # (10, 1, 5, 5)
    b1 = np.asarray(params["conv1_b"], f32)   # (10,)
    w2 = np.asarray(params["conv2_w"], f32)   # (20, 10, 5, 5)
    b2 = np.asarray(params["conv2_b"], f32)   # (20,)
    fc1w = np.asarray(params["fc1_w"], f32)   # (50, 320)
    fc1b = np.asarray(params["fc1_b"], f32)   # (50,)
    fc2w = np.asarray(params["fc2_w"], f32)   # (10, 50)
    fc2b = np.asarray(params["fc2_b"], f32)   # (10,)

    # conv1 banded weight (141, 240): rows kh*28+iw (+ row 140 = bias via the
    # ones-column of the LHS), cols parity*120 + c*12 + pw <-> (c, ow=2*pw+parity).
    B1 = np.zeros((141, 240), f32)
    for c in range(10):
        for pw in range(12):
            for parity in range(2):
                ow = 2 * pw + parity
                col = parity * 120 + c * 12 + pw
                for kh in range(5):
                    B1[kh * 28 + ow: kh * 28 + ow + 5, col] = w1[c, 0, kh, :]
                B1[140, col] = b1[c]

    # conv2 banded weights (5, 120, 160): rows c*12+iw of p1, cols
    # parity*80 + o*4 + pw2 <-> (o, ow2=2*pw2+parity).
    B2 = np.zeros((5, 120, 160), f32)
    b2row = np.zeros((1, 160), f32)
    for o in range(20):
        for pw2 in range(4):
            for parity in range(2):
                ow2 = 2 * pw2 + parity
                col = parity * 80 + o * 4 + pw2
                for c in range(10):
                    for kh in range(5):
                        B2[kh, c * 12 + ow2: c * 12 + ow2 + 5, col] = w2[o, c, kh, :]
                b2row[0, col] = b2[o]

    # fc1: torch flat index = o*16 + ph2*4 + pw2; p2 columns are o*4 + pw2.
    W1r = np.zeros((4, 80, 50), f32)
    for ph2 in range(4):
        idx = (np.arange(20)[:, None] * 16 + ph2 * 4 + np.arange(4)[None, :])
        W1r[ph2] = fc1w[:, idx.reshape(-1)].T          # (80, 50)
    b1f = fc1b[None, :]                                # (1, 50)

    # fc2 padded to 128 output lanes; pad bias = -1e30 so log_softmax is inert.
    W2p = np.zeros((50, 128), f32)
    W2p[:, :10] = fc2w.T
    b2f = np.full((1, 128), -1e30, f32)
    b2f[0, :10] = fc2b

    packed = (B1, B2, b2row, W1r, b1f, W2p, b2f)
    return tuple(jnp.asarray(a) for a in packed)


# ------------------------------- forward pass -------------------------------

# Even conv1 output rows first, then odd (row-pool fold of the LHS).
_OH_ORDER = np.concatenate([np.arange(0, 24, 2), np.arange(1, 24, 2)]).astype(np.int32)


def _build_lhs(img):
    # A[r, kh*28 + w] = img[oh(r) + kh, w]; A[:, 140] = 1 (bias column).
    # Pure layout plumbing (row replication/reorder), done once in the wrapper.
    oh = jnp.asarray(_OH_ORDER)
    parts = [img[oh + kh, :] for kh in range(5)]
    ones = jnp.ones((24, 1), jnp.float32)
    return jnp.concatenate(parts + [ones], axis=1)      # (24, 141)


def _full_spec(shape):
    nd = len(shape)
    return pl.BlockSpec(tuple(shape), lambda i: (0,) * nd)


def lenet2_forward(packed, x):
    # x: (1, 1, 28, 28) float32, NCHW (batch fixed at 1 by the module).
    img = x[0, 0].astype(jnp.float32)                   # (28, 28)
    lhs = _build_lhs(img)
    args = (lhs,) + tuple(packed)
    out = pl.pallas_call(
        _lenet2_kernel,
        out_shape=jax.ShapeDtypeStruct((1, 128), jnp.float32),
        grid=(1,),
        in_specs=[_full_spec(a.shape) for a in args],
        out_specs=pl.BlockSpec((1, 128), lambda i: (0, 0)),
        compiler_params=pltpu.CompilerParams(
            dimension_semantics=("arbitrary",)),
    )(*args)
    return out[:, :10]                                  # (1, 10)


lenet2_forward_jit = jax.jit(lenet2_forward)


# --------------------------- init & pure-JAX reference ----------------------

def init_params(key):
    # Deterministic init mimicking PyTorch's default U(-1/sqrt(fan_in), +...).
    ks = jax.random.split(key, 8)

    def u(k, shape, fan_in):
        bound = 1.0 / (fan_in ** 0.5)
        return jax.random.uniform(k, shape, jnp.float32, -bound, bound)

    return {
        "conv1_w": u(ks[0], (10, 1, 5, 5), 1 * 5 * 5),
        "conv1_b": u(ks[1], (10,), 1 * 5 * 5),
        "conv2_w": u(ks[2], (20, 10, 5, 5), 10 * 5 * 5),
        "conv2_b": u(ks[3], (20,), 10 * 5 * 5),
        "fc1_w":   u(ks[4], (50, 320), 320),
        "fc1_b":   u(ks[5], (50,), 320),
        "fc2_w":   u(ks[6], (10, 50), 50),
        "fc2_b":   u(ks[7], (10,), 50),
    }


def _im2col(x, K):
    # x: (C, H, W) -> (OH*OW, C*K*K), feature order (c, kh, kw).
    C, H, W = x.shape
    OH, OW = H - K + 1, W - K + 1
    cols = []
    for c in range(C):
        for kh in range(K):
            for kw in range(K):
                cols.append(x[c, kh:kh + OH, kw:kw + OW].reshape(OH * OW))
    return jnp.stack(cols, axis=1)


def reference_forward(params, x):
    # Plain-JAX reference of the PyTorch module (eval mode).
    with jax.default_matmul_precision("highest"):
        img = x[0]                                                   # (1, 28, 28)
        y1 = _im2col(img, 5) @ params["conv1_w"].reshape(10, 25).T + params["conv1_b"]
        y1 = y1.reshape(24, 24, 10).transpose(2, 0, 1)               # (10, 24, 24)
        y1 = jnp.maximum(y1.reshape(10, 12, 2, 12, 2).max(axis=(2, 4)), 0.0)
        y2 = _im2col(y1, 5) @ params["conv2_w"].reshape(20, 250).T + params["conv2_b"]
        y2 = y2.reshape(8, 8, 20).transpose(2, 0, 1)                 # (20, 8, 8)
        y2 = jnp.maximum(y2.reshape(20, 4, 2, 4, 2).max(axis=(2, 4)), 0.0)
        flat = y2.reshape(1, 320)
        h = jnp.maximum(flat @ params["fc1_w"].T + params["fc1_b"], 0.0)
        y = h @ params["fc2_w"].T + params["fc2_b"]
        return jax.nn.log_softmax(y, axis=1)


# ----------------------------------- main -----------------------------------

if __name__ == "__main__":
    key = jax.random.PRNGKey(0)
    pkey, xkey = jax.random.split(key)
    params = init_params(pkey)
    x = jax.random.normal(xkey, (1, 1, 28, 28), jnp.float32)

    packed = pack_params(params)
    out = lenet2_forward_jit(packed, x)
    out = jax.block_until_ready(out)
    assert out.shape == (1, 10) and out.dtype == jnp.float32

    ref = jax.block_until_ready(reference_forward(params, x))
    max_err = float(jnp.max(jnp.abs(out - ref)))
    assert max_err < 1e-2, f"mismatch vs reference: max abs err {max_err}"

    print("KERNEL_OK")
</pallas_src>

<mosaic_0001>
module attributes {stable_mosaic.version = 11 : i64} {
  func.func @_lenet2_kernel(%arg0: i32, %arg1: memref<24x141xf32, #tpu.memory_space<vmem>>, %arg2: memref<141x240xf32, #tpu.memory_space<vmem>>, %arg3: memref<5x120x160xf32, #tpu.memory_space<vmem>>, %arg4: memref<1x160xf32, #tpu.memory_space<vmem>>, %arg5: memref<4x80x50xf32, #tpu.memory_space<vmem>>, %arg6: memref<1x50xf32, #tpu.memory_space<vmem>>, %arg7: memref<50x128xf32, #tpu.memory_space<vmem>>, %arg8: memref<1x128xf32, #tpu.memory_space<vmem>>, %arg9: memref<1x128xf32, #tpu.memory_space<vmem>>) attributes {dimension_semantics = [#tpu.dimension_semantics<arbitrary>], iteration_bounds = array<i64: 1>, scalar_prefetch = 0 : i64, scratch_operands = 0 : i64, tpu.core_type = #tpu.core_type<tc>, window_params = [{pipeline_mode = #tpu.pipeline_mode<synchronous>, transform_indices = @transform_0, window_bounds = array<i64: 24, 141>}, {pipeline_mode = #tpu.pipeline_mode<synchronous>, transform_indices = @transform_1, window_bounds = array<i64: 141, 240>}, {pipeline_mode = #tpu.pipeline_mode<synchronous>, transform_indices = @transform_2, window_bounds = array<i64: 5, 120, 160>}, {pipeline_mode = #tpu.pipeline_mode<synchronous>, transform_indices = @transform_3, window_bounds = array<i64: 1, 160>}, {pipeline_mode = #tpu.pipeline_mode<synchronous>, transform_indices = @transform_4, window_bounds = array<i64: 4, 80, 50>}, {pipeline_mode = #tpu.pipeline_mode<synchronous>, transform_indices = @transform_5, window_bounds = array<i64: 1, 50>}, {pipeline_mode = #tpu.pipeline_mode<synchronous>, transform_indices = @transform_6, window_bounds = array<i64: 50, 128>}, {pipeline_mode = #tpu.pipeline_mode<synchronous>, transform_indices = @transform_7, window_bounds = array<i64: 1, 128>}, {pipeline_mode = #tpu.pipeline_mode<synchronous>, transform_indices = @transform_8, window_bounds = array<i64: 1, 128>}]} {
    %c0 = arith.constant 0 : index
    %c0_0 = arith.constant 0 : index
    %0 = vector.load %arg1[%c0, %c0_0] : memref<24x141xf32, #tpu.memory_space<vmem>>, vector<24x141xf32>
    %c0_1 = arith.constant 0 : index
    %c0_2 = arith.constant 0 : index
    %1 = vector.load %arg2[%c0_1, %c0_2] : memref<141x240xf32, #tpu.memory_space<vmem>>, vector<141x240xf32>
    %cst = arith.constant dense<0.000000e+00> : vector<24x240xf32>
    %2 = tpu.matmul %0, %1, %cst {dimension_numbers = #tpu.dot_dimension_numbers<[1], [0], [0], [1], [0, 0, 1, 1], [], []>} : vector<24x141xf32>, vector<141x240xf32>, vector<24x240xf32> -> vector<24x240xf32>
    %3 = vector.extract_strided_slice %2 {offsets = [0, 0], sizes = [24, 120], strides = [1, 1]} : vector<24x240xf32> to vector<24x120xf32>
    %4 = vector.extract_strided_slice %2 {offsets = [0, 120], sizes = [24, 120], strides = [1, 1]} : vector<24x240xf32> to vector<24x120xf32>
    %5 = arith.maximumf %3, %4 : vector<24x120xf32>
    %6 = vector.extract_strided_slice %5 {offsets = [0, 0], sizes = [12, 120], strides = [1, 1]} : vector<24x120xf32> to vector<12x120xf32>
    %7 = vector.extract_strided_slice %5 {offsets = [12, 0], sizes = [12, 120], strides = [1, 1]} : vector<24x120xf32> to vector<12x120xf32>
    %8 = arith.maximumf %6, %7 : vector<12x120xf32>
    %cst_3 = arith.constant 0.000000e+00 : f32
    %9 = vector.broadcast %cst_3 : f32 to vector<12x120xf32>
    %10 = arith.maximumf %8, %9 : vector<12x120xf32>
    %11 = vector.extract_strided_slice %10 {offsets = [0, 0], sizes = [8, 120], strides = [1, 1]} : vector<12x120xf32> to vector<8x120xf32>
    %c0_4 = arith.constant 0 : index
    %c0_5 = arith.constant 0 : index
    %c0_6 = arith.constant 0 : index
    %12 = vector.load %arg3[%c0_4, %c0_5, %c0_6] : memref<5x120x160xf32, #tpu.memory_space<vmem>>, vector<1x120x160xf32>
    %13 = vector.shape_cast %12 : vector<1x120x160xf32> to vector<120x160xf32>
    %cst_7 = arith.constant dense<0.000000e+00> : vector<8x160xf32>
    %14 = tpu.matmul %11, %13, %cst_7 {dimension_numbers = #tpu.dot_dimension_numbers<[1], [0], [0], [1], [0, 0, 1, 1], [], []>} : vector<8x120xf32>, vector<120x160xf32>, vector<8x160xf32> -> vector<8x160xf32>
    %15 = vector.extract_strided_slice %10 {offsets = [1, 0], sizes = [8, 120], strides = [1, 1]} : vector<12x120xf32> to vector<8x120xf32>
    %c1 = arith.constant 1 : index
    %c0_8 = arith.constant 0 : index
    %c0_9 = arith.constant 0 : index
    %16 = vector.load %arg3[%c1, %c0_8, %c0_9] : memref<5x120x160xf32, #tpu.memory_space<vmem>>, vector<1x120x160xf32>
    %17 = vector.shape_cast %16 : vector<1x120x160xf32> to vector<120x160xf32>
    %cst_10 = arith.constant dense<0.000000e+00> : vector<8x160xf32>
    %18 = tpu.matmul %15, %17, %cst_10 {dimension_numbers = #tpu.dot_dimension_numbers<[1], [0], [0], [1], [0, 0, 1, 1], [], []>} : vector<8x120xf32>, vector<120x160xf32>, vector<8x160xf32> -> vector<8x160xf32>
    %19 = arith.addf %14, %18 : vector<8x160xf32>
    %20 = vector.extract_strided_slice %10 {offsets = [2, 0], sizes = [8, 120], strides = [1, 1]} : vector<12x120xf32> to vector<8x120xf32>
    %c2 = arith.constant 2 : index
    %c0_11 = arith.constant 0 : index
    %c0_12 = arith.constant 0 : index
    %21 = vector.load %arg3[%c2, %c0_11, %c0_12] : memref<5x120x160xf32, #tpu.memory_space<vmem>>, vector<1x120x160xf32>
    %22 = vector.shape_cast %21 : vector<1x120x160xf32> to vector<120x160xf32>
    %cst_13 = arith.constant dense<0.000000e+00> : vector<8x160xf32>
    %23 = tpu.matmul %20, %22, %cst_13 {dimension_numbers = #tpu.dot_dimension_numbers<[1], [0], [0], [1], [0, 0, 1, 1], [], []>} : vector<8x120xf32>, vector<120x160xf32>, vector<8x160xf32> -> vector<8x160xf32>
    %24 = arith.addf %19, %23 : vector<8x160xf32>
    %25 = vector.extract_strided_slice %10 {offsets = [3, 0], sizes = [8, 120], strides = [1, 1]} : vector<12x120xf32> to vector<8x120xf32>
    %c3 = arith.constant 3 : index
    %c0_14 = arith.constant 0 : index
    %c0_15 = arith.constant 0 : index
    %26 = vector.load %arg3[%c3, %c0_14, %c0_15] : memref<5x120x160xf32, #tpu.memory_space<vmem>>, vector<1x120x160xf32>
    %27 = vector.shape_cast %26 : vector<1x120x160xf32> to vector<120x160xf32>
    %cst_16 = arith.constant dense<0.000000e+00> : vector<8x160xf32>
    %28 = tpu.matmul %25, %27, %cst_16 {dimension_numbers = #tpu.dot_dimension_numbers<[1], [0], [0], [1], [0, 0, 1, 1], [], []>} : vector<8x120xf32>, vector<120x160xf32>, vector<8x160xf32> -> vector<8x160xf32>
    %29 = arith.addf %24, %28 : vector<8x160xf32>
    %30 = vector.extract_strided_slice %10 {offsets = [4, 0], sizes = [8, 120], strides = [1, 1]} : vector<12x120xf32> to vector<8x120xf32>
    %c4 = arith.constant 4 : index
    %c0_17 = arith.constant 0 : index
    %c0_18 = arith.constant 0 : index
    %31 = vector.load %arg3[%c4, %c0_17, %c0_18] : memref<5x120x160xf32, #tpu.memory_space<vmem>>, vector<1x120x160xf32>
    %32 = vector.shape_cast %31 : vector<1x120x160xf32> to vector<120x160xf32>
    %cst_19 = arith.constant dense<0.000000e+00> : vector<8x160xf32>
    %33 = tpu.matmul %30, %32, %cst_19 {dimension_numbers = #tpu.dot_dimension_numbers<[1], [0], [0], [1], [0, 0, 1, 1], [], []>} : vector<8x120xf32>, vector<120x160xf32>, vector<8x160xf32> -> vector<8x160xf32>
    %34 = arith.addf %29, %33 : vector<8x160xf32>
    %c0_20 = arith.constant 0 : index
    %c0_21 = arith.constant 0 : index
    %35 = vector.load %arg4[%c0_20, %c0_21] : memref<1x160xf32, #tpu.memory_space<vmem>>, vector<1x160xf32>
    %36 = vector.broadcast %35 : vector<1x160xf32> to vector<8x160xf32>
    %37 = arith.addf %34, %36 : vector<8x160xf32>
    %38 = vector.extract_strided_slice %37 {offsets = [0, 0], sizes = [8, 80], strides = [1, 1]} : vector<8x160xf32> to vector<8x80xf32>
    %39 = vector.extract_strided_slice %37 {offsets = [0, 80], sizes = [8, 80], strides = [1, 1]} : vector<8x160xf32> to vector<8x80xf32>
    %40 = arith.maximumf %38, %39 : vector<8x80xf32>
    %cst_22 = arith.constant 0.000000e+00 : f32
    %41 = vector.broadcast %cst_22 : f32 to vector<8x80xf32>
    %42 = arith.maximumf %40, %41 : vector<8x80xf32>
    %c0_23 = arith.constant 0 : index
    %c0_24 = arith.constant 0 : index
    %43 = vector.load %arg6[%c0_23, %c0_24] : memref<1x50xf32, #tpu.memory_space<vmem>>, vector<1x50xf32>
    %44 = vector.extract_strided_slice %42 {offsets = [0, 0], sizes = [1, 80], strides = [1, 1]} : vector<8x80xf32> to vector<1x80xf32>
    %45 = vector.extract_strided_slice %42 {offsets = [1, 0], sizes = [1, 80], strides = [1, 1]} : vector<8x80xf32> to vector<1x80xf32>
    %46 = arith.maximumf %44, %45 : vector<1x80xf32>
    %c0_25 = arith.constant 0 : index
    %c0_26 = arith.constant 0 : index
    %c0_27 = arith.constant 0 : index
    %47 = vector.load %arg5[%c0_25, %c0_26, %c0_27] : memref<4x80x50xf32, #tpu.memory_space<vmem>>, vector<1x80x50xf32>
    %48 = vector.shape_cast %47 : vector<1x80x50xf32> to vector<80x50xf32>
    %cst_28 = arith.constant dense<0.000000e+00> : vector<1x50xf32>
    %49 = tpu.matmul %46, %48, %cst_28 {dimension_numbers = #tpu.dot_dimension_numbers<[1], [0], [0], [1], [0, 0, 1, 1], [], []>} : vector<1x80xf32>, vector<80x50xf32>, vector<1x50xf32> -> vector<1x50xf32>
    %50 = arith.addf %43, %49 : vector<1x50xf32>
    %51 = vector.extract_strided_slice %42 {offsets = [2, 0], sizes = [1, 80], strides = [1, 1]} : vector<8x80xf32> to vector<1x80xf32>
    %52 = vector.extract_strided_slice %42 {offsets = [3, 0], sizes = [1, 80], strides = [1, 1]} : vector<8x80xf32> to vector<1x80xf32>
    %53 = arith.maximumf %51, %52 : vector<1x80xf32>
    %c1_29 = arith.constant 1 : index
    %c0_30 = arith.constant 0 : index
    %c0_31 = arith.constant 0 : index
    %54 = vector.load %arg5[%c1_29, %c0_30, %c0_31] : memref<4x80x50xf32, #tpu.memory_space<vmem>>, vector<1x80x50xf32>
    %55 = vector.shape_cast %54 : vector<1x80x50xf32> to vector<80x50xf32>
    %cst_32 = arith.constant dense<0.000000e+00> : vector<1x50xf32>
    %56 = tpu.matmul %53, %55, %cst_32 {dimension_numbers = #tpu.dot_dimension_numbers<[1], [0], [0], [1], [0, 0, 1, 1], [], []>} : vector<1x80xf32>, vector<80x50xf32>, vector<1x50xf32> -> vector<1x50xf32>
    %57 = arith.addf %50, %56 : vector<1x50xf32>
    %58 = vector.extract_strided_slice %42 {offsets = [4, 0], sizes = [1, 80], strides = [1, 1]} : vector<8x80xf32> to vector<1x80xf32>
    %59 = vector.extract_strided_slice %42 {offsets = [5, 0], sizes = [1, 80], strides = [1, 1]} : vector<8x80xf32> to vector<1x80xf32>
    %60 = arith.maximumf %58, %59 : vector<1x80xf32>
    %c2_33 = arith.constant 2 : index
    %c0_34 = arith.constant 0 : index
    %c0_35 = arith.constant 0 : index
    %61 = vector.load %arg5[%c2_33, %c0_34, %c0_35] : memref<4x80x50xf32, #tpu.memory_space<vmem>>, vector<1x80x50xf32>
    %62 = vector.shape_cast %61 : vector<1x80x50xf32> to vector<80x50xf32>
    %cst_36 = arith.constant dense<0.000000e+00> : vector<1x50xf32>
    %63 = tpu.matmul %60, %62, %cst_36 {dimension_numbers = #tpu.dot_dimension_numbers<[1], [0], [0], [1], [0, 0, 1, 1], [], []>} : vector<1x80xf32>, vector<80x50xf32>, vector<1x50xf32> -> vector<1x50xf32>
    %64 = arith.addf %57, %63 : vector<1x50xf32>
    %65 = vector.extract_strided_slice %42 {offsets = [6, 0], sizes = [1, 80], strides = [1, 1]} : vector<8x80xf32> to vector<1x80xf32>
    %66 = vector.extract_strided_slice %42 {offsets = [7, 0], sizes = [1, 80], strides = [1, 1]} : vector<8x80xf32> to vector<1x80xf32>
    %67 = arith.maximumf %65, %66 : vector<1x80xf32>
    %c3_37 = arith.constant 3 : index
    %c0_38 = arith.constant 0 : index
    %c0_39 = arith.constant 0 : index
    %68 = vector.load %arg5[%c3_37, %c0_38, %c0_39] : memref<4x80x50xf32, #tpu.memory_space<vmem>>, vector<1x80x50xf32>
    %69 = vector.shape_cast %68 : vector<1x80x50xf32> to vector<80x50xf32>
    %cst_40 = arith.constant dense<0.000000e+00> : vector<1x50xf32>
    %70 = tpu.matmul %67, %69, %cst_40 {dimension_numbers = #tpu.dot_dimension_numbers<[1], [0], [0], [1], [0, 0, 1, 1], [], []>} : vector<1x80xf32>, vector<80x50xf32>, vector<1x50xf32> -> vector<1x50xf32>
    %71 = arith.addf %64, %70 : vector<1x50xf32>
    %cst_41 = arith.constant 0.000000e+00 : f32
    %72 = vector.broadcast %cst_41 : f32 to vector<1x50xf32>
    %73 = arith.maximumf %71, %72 : vector<1x50xf32>
    %c0_42 = arith.constant 0 : index
    %c0_43 = arith.constant 0 : index
    %74 = vector.load %arg7[%c0_42, %c0_43] : memref<50x128xf32, #tpu.memory_space<vmem>>, vector<50x128xf32>
    %cst_44 = arith.constant dense<0.000000e+00> : vector<1x128xf32>
    %75 = tpu.matmul %73, %74, %cst_44 {dimension_numbers = #tpu.dot_dimension_numbers<[1], [0], [0], [1], [0, 0, 1, 1], [], []>} : vector<1x50xf32>, vector<50x128xf32>, vector<1x128xf32> -> vector<1x128xf32>
    %c0_45 = arith.constant 0 : index
    %c0_46 = arith.constant 0 : index
    %76 = vector.load %arg8[%c0_45, %c0_46] : memref<1x128xf32, #tpu.memory_space<vmem>>, vector<1x128xf32>
    %77 = arith.addf %75, %76 : vector<1x128xf32>
    %cst_47 = arith.constant dense<0xFF800000> : vector<1xf32>
    %78 = vector.multi_reduction <maximumf>, %77, %cst_47 [1] : vector<1x128xf32> to vector<1xf32>
    %79 = vector.shape_cast %78 : vector<1xf32> to vector<1x1xf32>
    %80 = vector.broadcast %79 : vector<1x1xf32> to vector<1x128xf32>
    %81 = arith.subf %77, %80 : vector<1x128xf32>
    %82 = math.exp %81 : vector<1x128xf32>
    %cst_48 = arith.constant dense<0.000000e+00> : vector<1xf32>
    %83 = vector.multi_reduction <add>, %82, %cst_48 [1] : vector<1x128xf32> to vector<1xf32>
    %84 = vector.shape_cast %83 : vector<1xf32> to vector<1x1xf32>
    %85 = math.log %84 : vector<1x1xf32>
    %86 = vector.broadcast %85 : vector<1x1xf32> to vector<1x128xf32>
    %87 = arith.subf %81, %86 : vector<1x128xf32>
    %c0_49 = arith.constant 0 : index
    %c0_50 = arith.constant 0 : index
    %88 = vector.load %arg9[%c0_49, %c0_50] : memref<1x128xf32, #tpu.memory_space<vmem>>, vector<1x128xf32>
    tpu.vector_store %arg9[%c0_49, %c0_50], %87 {strides = array<i32>} : memref<1x128xf32, #tpu.memory_space<vmem>>, vector<1x128xf32>,
    return
  }
  func.func @transform_0(%arg0: i32) -> (i32, i32) {
    %c0_i32 = arith.constant 0 : i32
    %c0_i32_0 = arith.constant 0 : i32
    %c0_i32_1 = arith.constant 0 : i32
    return %c0_i32, %c0_i32_0 : i32, i32
  }
  func.func @transform_1(%arg0: i32) -> (i32, i32) {
    %c0_i32 = arith.constant 0 : i32
    %c0_i32_0 = arith.constant 0 : i32
    %c0_i32_1 = arith.constant 0 : i32
    return %c0_i32, %c0_i32_0 : i32, i32
  }
  func.func @transform_2(%arg0: i32) -> (i32, i32, i32) {
    %c0_i32 = arith.constant 0 : i32
    %c0_i32_0 = arith.constant 0 : i32
    %c0_i32_1 = arith.constant 0 : i32
    %c0_i32_2 = arith.constant 0 : i32
    return %c0_i32, %c0_i32_0, %c0_i32_1 : i32, i32, i32
  }
  func.func @transform_3(%arg0: i32) -> (i32, i32) {
    %c0_i32 = arith.constant 0 : i32
    %c0_i32_0 = arith.constant 0 : i32
    %c0_i32_1 = arith.constant 0 : i32
    return %c0_i32, %c0_i32_0 : i32, i32
  }
  func.func @transform_4(%arg0: i32) -> (i32, i32, i32) {
    %c0_i32 = arith.constant 0 : i32
    %c0_i32_0 = arith.constant 0 : i32
    %c0_i32_1 = arith.constant 0 : i32
    %c0_i32_2 = arith.constant 0 : i32
    return %c0_i32, %c0_i32_0, %c0_i32_1 : i32, i32, i32
  }
  func.func @transform_5(%arg0: i32) -> (i32, i32) {
    %c0_i32 = arith.constant 0 : i32
    %c0_i32_0 = arith.constant 0 : i32
    %c0_i32_1 = arith.constant 0 : i32
    return %c0_i32, %c0_i32_0 : i32, i32
  }
  func.func @transform_6(%arg0: i32) -> (i32, i32) {
    %c0_i32 = arith.constant 0 : i32
    %c0_i32_0 = arith.constant 0 : i32
    %c0_i32_1 = arith.constant 0 : i32
    return %c0_i32, %c0_i32_0 : i32, i32
  }
  func.func @transform_7(%arg0: i32) -> (i32, i32) {
    %c0_i32 = arith.constant 0 : i32
    %c0_i32_0 = arith.constant 0 : i32
    %c0_i32_1 = arith.constant 0 : i32
    return %c0_i32, %c0_i32_0 : i32, i32
  }
  func.func @transform_8(%arg0: i32) -> (i32, i32) {
    %c0_i32 = arith.constant 0 : i32
    %c0_i32_0 = arith.constant 0 : i32
    %c0_i32_1 = arith.constant 0 : i32
    return %c0_i32, %c0_i32_0 : i32, i32
  }
}

</mosaic_0001>

<llo_original>
// kernel: lenet2_forward.1
$region0: #{lenet2_forward.1}
  #allocation0 [shape = 'u32[]', space=smem, size = 0x4, offset = 0x4, fixed_abs, tag = 'smem constant byte address 0x4 - core index']
  #allocation1 [shape = 'u32[144,128]{1,0:T(1,128)}', space=vmem, size = 0x12000, scoped, tag = 'internal scratch']
  %s0 = inlined_call_operand.vmem [shape: f32[24,141], index: 0, kind: input, shape index: {}]
  %s1 = inlined_call_operand.vmem [shape: f32[141,240], index: 1, kind: input, shape index: {}]
  %s2 = inlined_call_operand.vmem [shape: f32[5,120,160], index: 2, kind: input, shape index: {}]
  %s3 = inlined_call_operand.vmem [shape: f32[1,160], index: 3, kind: input, shape index: {}]
  %s4 = inlined_call_operand.vmem [shape: f32[4,80,50], index: 4, kind: input, shape index: {}]
  %s5 = inlined_call_operand.vmem [shape: f32[1,50], index: 5, kind: input, shape index: {}]
  %s6 = inlined_call_operand.vmem [shape: f32[50,128], index: 6, kind: input, shape index: {}]
  %s7 = inlined_call_operand.vmem [shape: f32[1,128], index: 7, kind: input, shape index: {}]
  %s8 = inlined_call_operand.hbm [shape: f32[1,128], index: 8, kind: output, shape index: {}]
  %s9 = sld [smem:[#allocation0]]
  $region42: #{lenet2_forward.1} parent=0
    _
  %s11 = ssub.s32 1, %s9
  %s12 = scalar_select 0, %s11, %s9
  $region1: #{lenet2_forward.1} parent=0
    #allocation2 [shape = 'u8[512]{0}', space=vmem, size = 0x400, scoped, tag = 'output window, operand 0, single buffered']
    #allocation3 [shape = 's32[1]{0}', space=sflag, size = 0x4, scoped, tag = 'scoped memory for lenet2_forward.1']
    %13 = vsyncpa [#allocation3], 0
    // Predicated region
    $region2: #{lenet2_forward.1} parent=1 // pred_check
      _
    $region3: #{lenet2_forward.1} parent=1 // pred_check_branch
      %15 = sbr.rel (0) target = $region5
    $region4: #{lenet2_forward.1} parent=1 // pred_region
      _
    $region5: #{lenet2_forward.1} parent=1 // pred_fallthru
      _
    // Predicated region
    $region6: #{lenet2_forward.1} parent=1 // pred_check
      _
    $region7: #{lenet2_forward.1} parent=1 // pred_check_branch
      %17 = sbr.rel (0) target = $region9
    $region8: #{lenet2_forward.1} parent=1 // pred_region
      _
    $region9: #{lenet2_forward.1} parent=1 // pred_fallthru
      _
    // Predicated region
    $region10: #{lenet2_forward.1} parent=1 // pred_check
      _
    $region11: #{lenet2_forward.1} parent=1 // pred_check_branch
      %19 = sbr.rel (0) target = $region13
    $region12: #{lenet2_forward.1} parent=1 // pred_region
      _
    $region13: #{lenet2_forward.1} parent=1 // pred_fallthru
      _
    // Predicated region
    $region14: #{lenet2_forward.1} parent=1 // pred_check
      _
    $region15: #{lenet2_forward.1} parent=1 // pred_check_branch
      %21 = sbr.rel (0) target = $region17
    $region16: #{lenet2_forward.1} parent=1 // pred_region
      _
    $region17: #{lenet2_forward.1} parent=1 // pred_fallthru
      _
    // Predicated region
    $region18: #{lenet2_forward.1} parent=1 // pred_check
      _
    $region19: #{lenet2_forward.1} parent=1 // pred_check_branch
      %23 = sbr.rel (0) target = $region21
    $region20: #{lenet2_forward.1} parent=1 // pred_region
      _
    $region21: #{lenet2_forward.1} parent=1 // pred_fallthru
      _
    // Predicated region
    $region22: #{lenet2_forward.1} parent=1 // pred_check
      _
    $region23: #{lenet2_forward.1} parent=1 // pred_check_branch
      %25 = sbr.rel (0) target = $region25
    $region24: #{lenet2_forward.1} parent=1 // pred_region
      _
    $region25: #{lenet2_forward.1} parent=1 // pred_fallthru
      _
    // Predicated region
    $region26: #{lenet2_forward.1} parent=1 // pred_check
      _
    $region27: #{lenet2_forward.1} parent=1 // pred_check_branch
      %27 = sbr.rel (0) target = $region29
    $region28: #{lenet2_forward.1} parent=1 // pred_region
      _
    $region29: #{lenet2_forward.1} parent=1 // pred_fallthru
      _
    // Predicated region
    $region30: #{lenet2_forward.1} parent=1 // pred_check
      _
    $region31: #{lenet2_forward.1} parent=1 // pred_check_branch
      %29 = sbr.rel (0) target = $region33
    $region32: #{lenet2_forward.1} parent=1 // pred_region
      _
    $region33: #{lenet2_forward.1} parent=1 // pred_fallthru
      _
    %v30 = vld [vmem:[%s0] sm:$0xff]
    %v31 = vld [vmem:[%s0 + $0x8] sm:$0xff]
    %v32 = vld [vmem:[%s0 + $0x10] sm:$0xff]
    %v33 = vld [vmem:[%s0 + $0x18] sm:$0xff]
    %v34 = vld [vmem:[%s0 + $0x20] sm:$0xff]
    %v35 = vld [vmem:[%s0 + $0x28] sm:$0xff]
    %v36 = vld [vmem:[%s1] sm:$0xff]
    %v37 = vld [vmem:[%s1 + $0x8] sm:$0xff]
    %v38 = vld [vmem:[%s1 + $0x10] sm:$0xff]
    %v39 = vld [vmem:[%s1 + $0x18] sm:$0xff]
    %v40 = vld [vmem:[%s1 + $0x20] sm:$0xff]
    %v41 = vld [vmem:[%s1 + $0x28] sm:$0xff]
    %v42 = vld [vmem:[%s1 + $0x30] sm:$0xff]
    %v43 = vld [vmem:[%s1 + $0x38] sm:$0xff]
    %v44 = vld [vmem:[%s1 + $0x40] sm:$0xff]
    %v45 = vld [vmem:[%s1 + $0x48] sm:$0xff]
    %v46 = vld [vmem:[%s1 + $0x50] sm:$0xff]
    %v47 = vld [vmem:[%s1 + $0x58] sm:$0xff]
    %v48 = vld [vmem:[%s1 + $0x60] sm:$0xff]
    %v49 = vld [vmem:[%s1 + $0x68] sm:$0xff]
    %v50 = vld [vmem:[%s1 + $0x70] sm:$0xff]
    %v51 = vld [vmem:[%s1 + $0x78] sm:$0xff]
    %v52 = vld [vmem:[%s1 + $0x80] sm:$0xff]
    %v53 = vld [vmem:[%s1 + $0x88] sm:$0xff]
    %v54 = vld [vmem:[%s1 + $0x90] sm:$0xff]
    %v55 = vld [vmem:[%s1 + $0x98] sm:$0xff]
    %v56 = vld [vmem:[%s1 + $0xa0] sm:$0xff]
    %v57 = vld [vmem:[%s1 + $0xa8] sm:$0xff]
    %v58 = vld [vmem:[%s1 + $0xb0] sm:$0xff]
    %v59 = vld [vmem:[%s1 + $0xb8] sm:$0xff]
    %v60 = vld [vmem:[%s1 + $0xc0] sm:$0xff]
    %v61 = vld [vmem:[%s1 + $0xc8] sm:$0xff]
    %v62 = vld [vmem:[%s1 + $0xd0] sm:$0xff]
    %v63 = vld [vmem:[%s1 + $0xd8] sm:$0xff]
    %v64 = vld [vmem:[%s1 + $0xe0] sm:$0xff]
    %v65 = vld [vmem:[%s1 + $0xe8] sm:$0xff]
    %v66 = vld [vmem:[%s1 + $0xf0] sm:$0xff]
    %v67 = vld [vmem:[%s1 + $0xf8] sm:$0xff]
    %v68 = vld [vmem:[%s1 + $0x100] sm:$0xff]
    %v69 = vld [vmem:[%s1 + $0x108] sm:$0xff]
    %v70 = vld [vmem:[%s1 + $0x110] sm:$0x1f]
    %v71 = vld [vmem:[%s1 + $0x118] sm:$0x1f]
    %vm72 = vcmask 105472
    %v74 = vsel %vm72, %v31, 0
    %v77 = vsel %vm72, %v33, 0
    %v80 = vsel %vm72, %v35, 0
    %vm82 = vcmask 1044480
    %v84 = vsel %vm82, %v70, 0
    %v87 = vsel %vm82, %v71, 0
    %89 = vmatprep.subr.mxu0 %v67
    %90 = vmatpush1.msra.mxu0 %v66
    %91 = vmatprep.subr.mxu0 %v65
    %92 = vmatpush1.msra.mxu0 %v64
    %93 = vmatprep.subr.mxu0 %v63
    %94 = vmatpush1.msra.mxu0 %v62
    %95 = vmatprep.subr.mxu0 %v61
    %96 = vmatpush1.msra.mxu0 %v60
    %97 = vmatprep.subr.mxu0 %v59
    %98 = vmatpush1.msra.mxu0 %v58
    %99 = vmatprep.subr.mxu0 %v57
    %100 = vmatpush1.msra.mxu0 %v56
    %101 = vmatprep.subr.mxu0 %v55
    %102 = vmatpush1.msra.mxu0 %v54
    %103 = vmatprep.subr.mxu0 %v53
    %104 = vmatpush1.msra.mxu0 %v52
    %105 = vmatprep.subr.mxu0 %v51
    %106 = vmatpush1.msra.mxu0 %v50
    %107 = vmatprep.subr.mxu0 %v49
    %108 = vmatpush1.msra.mxu0 %v48
    %109 = vmatprep.subr.mxu0 %v47
    %110 = vmatpush1.msra.mxu0 %v46
    %111 = vmatprep.subr.mxu0 %v45
    %112 = vmatpush1.msra.mxu0 %v44
    %113 = vmatprep.subr.mxu0 %v43
    %114 = vmatpush1.msra.mxu0 %v42
    %115 = vmatprep.subr.mxu0 %v41
    %116 = vmatpush1.msra.mxu0 %v40
    %117 = vmatprep.subr.mxu0 %v39
    %118 = vmatpush1.msra.mxu0 %v38
    %119 = vmatprep.subr.mxu0 %v37
    %120 = vmatpush1.msra.mxu0 %v36
    %121 = vmatprep.subr.mxu0 0.0
    %122 = vmatpush2.msra.mxu0 0.0
    %123 = vmatprep.subr.mxu0 0.0
    %124 = vmatpush2.msra.mxu0 0.0
    %125 = vmatprep.subr.mxu0 0.0
    %126 = vmatpush2.msra.mxu0 0.0
    %127 = vmatprep.subr.mxu0 0.0
    %128 = vmatpush2.msra.mxu0 0.0
    %129 = vmatprep.subr.mxu0 0.0
    %130 = vmatpush2.msra.mxu0 0.0
    %131 = vmatprep.subr.mxu0 0.0
    %132 = vmatpush2.msra.mxu0 0.0
    %133 = vmatprep.subr.mxu0 0.0
    %134 = vmatpush2.msra.mxu0 0.0
    %135 = vmatprep.subr.mxu0 0.0
    %136 = vmatpush2.msra.mxu0 0.0
    %137 = vmatprep.subr.mxu0 0.0
    %138 = vmatpush2.msra.mxu0 0.0
    %139 = vmatprep.subr.mxu0 0.0
    %140 = vmatpush2.msra.mxu0 0.0
    %141 = vmatprep.subr.mxu0 0.0
    %142 = vmatpush2.msra.mxu0 0.0
    %143 = vmatprep.subr.mxu0 0.0
    %144 = vmatpush2.msra.mxu0 0.0
    %145 = vmatprep.subr.mxu0 0.0
    %146 = vmatpush2.msra.mxu0 0.0
    %147 = vmatprep.subr.mxu0 0.0
    %148 = vmatpush2.msra.mxu0 0.0
    %149 = vmatprep.subr.mxu0 %v87
    %150 = vmatpush2.msra.mxu0 %v84
    %151 = vmatprep.subr.mxu0 %v69
    %152 = vmatpush2.msra.mxu0 %v68
    %153 = vmatprep.mubr.f32.mxu0 %v74
    %154 = vmatmul.mubr.f32.gmra.mxu0 %v30
    %v155 = vpop.f32.mrf.mxu0
    %v156 = vadd.f32 0.0, %v155
    %v157 = vpop.f32.mrf.mxu0
    %v158 = vadd.f32 0.0, %v157
    %159 = vmatprep.mubr.f32.mxu0 %v77
    %160 = vmatmul.mubr.f32.gmra.mxu0 %v32
    %v161 = vpop.f32.mrf.mxu0
    %v162 = vadd.f32 0.0, %v161
    %v163 = vpop.f32.mrf.mxu0
    %v164 = vadd.f32 0.0, %v163
    %165 = vmatprep.mubr.f32.mxu0 %v80
    %166 = vmatmul.mubr.f32.gmra.mxu0 %v34
    %v167 = vpop.f32.mrf.mxu0
    %v168 = vadd.f32 0.0, %v167
    %v169 = vpop.f32.mrf.mxu0
    %v170 = vadd.f32 0.0, %v169
    %171 = vdwg.mxu0
    %178 = vrot.lane.b32.xlu0 %v156, 8
    %v179 = vpop.permute.xlu0 %178
    %180 = vrot.lane.b32.xlu0 %v158, 8
    %v181 = vpop.permute.xlu0 %180
    %182 = vrot.lane.b32.xlu0 %v162, 8
    %v183 = vpop.permute.xlu0 %182
    %184 = vrot.lane.b32.xlu0 %v164, 8
    %v185 = vpop.permute.xlu0 %184
    %186 = vrot.lane.b32.xlu0 %v168, 8
    %v187 = vpop.permute.xlu0 %186
    %188 = vrot.lane.b32.xlu0 %v170, 8
    %v189 = vpop.permute.xlu0 %188
    %vm190 = vcmask 64512
    %v191 = vsel %vm190, %v179, %v181
    %v192 = vsel %vm190, %v183, %v185
    %v193 = vsel %vm190, %v187, %v189
    %v197 = vmax.f32 %v156, %v191
    %v198 = vmax.f32 %v162, %v192
    %v199 = vmax.f32 %v168, %v193
    %vm202 = vcmask 1043456
    %v203 = vrot.slane %v198, 4
    %v204 = vrot.slane %v199, 4
    %v205 = vsel %vm202, %v203, %v204
    %v208 = vmax.f32 %v197, %v205
    %v209 = vmax.f32 %v198, %v204
    %v210 = vmax.f32 %v208, 0.0
    %v211 = vmax.f32 %v209, 0.0
    %v212 = vld [vmem:[%s2] sm:$0xff]
    %v213 = vld [vmem:[%s2 + $0x8] sm:$0xff]
    %v214 = vld [vmem:[%s2 + $0x10] sm:$0xff]
    %v215 = vld [vmem:[%s2 + $0x18] sm:$0xff]
    %v216 = vld [vmem:[%s2 + $0x20] sm:$0xff]
    %v217 = vld [vmem:[%s2 + $0x28] sm:$0xff]
    %v218 = vld [vmem:[%s2 + $0x30] sm:$0xff]
    %v219 = vld [vmem:[%s2 + $0x38] sm:$0xff]
    %v220 = vld [vmem:[%s2 + $0x40] sm:$0xff]
    %v221 = vld [vmem:[%s2 + $0x48] sm:$0xff]
    %v222 = vld [vmem:[%s2 + $0x50] sm:$0xff]
    %v223 = vld [vmem:[%s2 + $0x58] sm:$0xff]
    %v224 = vld [vmem:[%s2 + $0x60] sm:$0xff]
    %v225 = vld [vmem:[%s2 + $0x68] sm:$0xff]
    %v226 = vld [vmem:[%s2 + $0x70] sm:$0xff]
    %v227 = vld [vmem:[%s2 + $0x78] sm:$0xff]
    %v228 = vld [vmem:[%s2 + $0x80] sm:$0xff]
    %v229 = vld [vmem:[%s2 + $0x88] sm:$0xff]
    %v230 = vld [vmem:[%s2 + $0x90] sm:$0xff]
    %v231 = vld [vmem:[%s2 + $0x98] sm:$0xff]
    %v232 = vld [vmem:[%s2 + $0xa0] sm:$0xff]
    %v233 = vld [vmem:[%s2 + $0xa8] sm:$0xff]
    %v234 = vld [vmem:[%s2 + $0xb0] sm:$0xff]
    %v235 = vld [vmem:[%s2 + $0xb8] sm:$0xff]
    %v236 = vld [vmem:[%s2 + $0xc0] sm:$0xff]
    %v237 = vld [vmem:[%s2 + $0xc8] sm:$0xff]
    %v238 = vld [vmem:[%s2 + $0xd0] sm:$0xff]
    %v239 = vld [vmem:[%s2 + $0xd8] sm:$0xff]
    %v240 = vld [vmem:[%s2 + $0xe0] sm:$0xff]
    %v241 = vld [vmem:[%s2 + $0xe8] sm:$0xff]
    %s242 = scalar_lea.vmem %s2, 240
    %v243 = vld [vmem:[%s242] sm:$0xff]
    %v244 = vld [vmem:[%s242 + $0x8] sm:$0xff]
    %v245 = vld [vmem:[%s242 + $0x10] sm:$0xff]
    %v246 = vld [vmem:[%s242 + $0x18] sm:$0xff]
    %v247 = vld [vmem:[%s242 + $0x20] sm:$0xff]
    %v248 = vld [vmem:[%s242 + $0x28] sm:$0xff]
    %v249 = vld [vmem:[%s242 + $0x30] sm:$0xff]
    %v250 = vld [vmem:[%s242 + $0x38] sm:$0xff]
    %v251 = vld [vmem:[%s242 + $0x40] sm:$0xff]
    %v252 = vld [vmem:[%s242 + $0x48] sm:$0xff]
    %v253 = vld [vmem:[%s242 + $0x50] sm:$0xff]
    %v254 = vld [vmem:[%s242 + $0x58] sm:$0xff]
    %v255 = vld [vmem:[%s242 + $0x60] sm:$0xff]
    %v256 = vld [vmem:[%s242 + $0x68] sm:$0xff]
    %v257 = vld [vmem:[%s242 + $0x70] sm:$0xff]
    %v258 = vld [vmem:[%s242 + $0x78] sm:$0xff]
    %v259 = vld [vmem:[%s242 + $0x80] sm:$0xff]
    %v260 = vld [vmem:[%s242 + $0x88] sm:$0xff]
    %v261 = vld [vmem:[%s242 + $0x90] sm:$0xff]
    %v262 = vld [vmem:[%s242 + $0x98] sm:$0xff]
    %v263 = vld [vmem:[%s242 + $0xa0] sm:$0xff]
    %v264 = vld [vmem:[%s242 + $0xa8] sm:$0xff]
    %v265 = vld [vmem:[%s242 + $0xb0] sm:$0xff]
    %v266 = vld [vmem:[%s242 + $0xb8] sm:$0xff]
    %v267 = vld [vmem:[%s242 + $0xc0] sm:$0xff]
    %v268 = vld [vmem:[%s242 + $0xc8] sm:$0xff]
    %v269 = vld [vmem:[%s242 + $0xd0] sm:$0xff]
    %v270 = vld [vmem:[%s242 + $0xd8] sm:$0xff]
    %v271 = vld [vmem:[%s242 + $0xe0] sm:$0xff]
    %v272 = vld [vmem:[%s242 + $0xe8] sm:$0xff]
    %vm275 = vcmask 1046528
    %v276 = vrot.slane %v210, 1
    %v277 = vrot.slane %v211, 1
    %v278 = vsel %vm275, %v276, %v277
    %vm279 = vcmask 982016
    %v280 = vsel %vm279, %v278, 0
    %282 = vmatprep.subr.mxu0 0.0
    %283 = vmatpush1.msra.mxu0 0.0
    %284 = vmatprep.subr.mxu0 %v272
    %285 = vmatpush1.msra.mxu0 %v271
    %286 = vmatprep.subr.mxu0 %v270
    %287 = vmatpush1.msra.mxu0 %v269
    %288 = vmatprep.subr.mxu0 %v268
    %289 = vmatpush1.msra.mxu0 %v267
    %290 = vmatprep.subr.mxu0 %v266
    %291 = vmatpush1.msra.mxu0 %v265
    %292 = vmatprep.subr.mxu0 %v264
    %293 = vmatpush1.msra.mxu0 %v263
    %294 = vmatprep.subr.mxu0 %v262
    %295 = vmatpush1.msra.mxu0 %v261
    %296 = vmatprep.subr.mxu0 %v260
    %297 = vmatpush1.msra.mxu0 %v259
    %298 = vmatprep.subr.mxu0 %v258
    %299 = vmatpush1.msra.mxu0 %v257
    %300 = vmatprep.subr.mxu0 %v256
    %301 = vmatpush1.msra.mxu0 %v255
    %302 = vmatprep.subr.mxu0 %v254
    %303 = vmatpush1.msra.mxu0 %v253
    %304 = vmatprep.subr.mxu0 %v252
    %305 = vmatpush1.msra.mxu0 %v251
    %306 = vmatprep.subr.mxu0 %v250
    %307 = vmatpush1.msra.mxu0 %v249
    %308 = vmatprep.subr.mxu0 %v248
    %309 = vmatpush1.msra.mxu0 %v247
    %310 = vmatprep.subr.mxu0 %v246
    %311 = vmatpush1.msra.mxu0 %v245
    %312 = vmatprep.subr.mxu0 %v244
    %313 = vmatpush1.msra.mxu0 %v243
    %314 = vmatprep.subr.mxu0 0.0
    %315 = vmatpush2.msra.mxu0 0.0
    %316 = vmatprep.subr.mxu0 0.0
    %317 = vmatpush2.msra.mxu0 0.0
    %318 = vmatprep.subr.mxu0 0.0
    %319 = vmatpush2.msra.mxu0 0.0
    %320 = vmatprep.subr.mxu0 0.0
    %321 = vmatpush2.msra.mxu0 0.0
    %322 = vmatprep.subr.mxu0 0.0
    %323 = vmatpush2.msra.mxu0 0.0
    %324 = vmatprep.subr.mxu0 0.0
    %325 = vmatpush2.msra.mxu0 0.0
    %326 = vmatprep.subr.mxu0 0.0
    %327 = vmatpush2.msra.mxu0 0.0
    %328 = vmatprep.subr.mxu0 0.0
    %329 = vmatpush2.msra.mxu0 0.0
    %330 = vmatprep.subr.mxu0 0.0
    %331 = vmatpush2.msra.mxu0 0.0
    %332 = vmatprep.subr.mxu0 0.0
    %333 = vmatpush2.msra.mxu0 0.0
    %334 = vmatprep.subr.mxu0 0.0
    %335 = vmatpush2.msra.mxu0 0.0
    %336 = vmatprep.subr.mxu0 0.0
    %337 = vmatpush2.msra.mxu0 0.0
    %338 = vmatprep.subr.mxu0 0.0
    %339 = vmatpush2.msra.mxu0 0.0
    %340 = vmatprep.subr.mxu0 0.0
    %341 = vmatpush2.msra.mxu0 0.0
    %342 = vmatprep.subr.mxu0 0.0
    %343 = vmatpush2.msra.mxu0 0.0
    %344 = vmatprep.subr.mxu0 0.0
    %345 = vmatpush2.msra.mxu0 0.0
    %346 = vmatprep.mubr.f32.mxu0 0.0
    %347 = vmatmul.mubr.f32.gmra.mxu0 %v280
    %v348 = vpop.f32.mrf.mxu0
    %v349 = vadd.f32 0.0, %v348
    %v350 = vpop.f32.mrf.mxu0
    %v351 = vadd.f32 0.0, %v350
    %352 = vdwg.mxu0
    %v353 = vsel %vm279, %v210, 0
    %355 = vmatprep.subr.mxu0 0.0
    %356 = vmatpush1.msra.mxu0 0.0
    %357 = vmatprep.subr.mxu0 %v241
    %358 = vmatpush1.msra.mxu0 %v240
    %359 = vmatprep.subr.mxu0 %v239
    %360 = vmatpush1.msra.mxu0 %v238
    %361 = vmatprep.subr.mxu0 %v237
    %362 = vmatpush1.msra.mxu0 %v236
    %363 = vmatprep.subr.mxu0 %v235
    %364 = vmatpush1.msra.mxu0 %v234
    %365 = vmatprep.subr.mxu0 %v233
    %366 = vmatpush1.msra.mxu0 %v232
    %367 = vmatprep.subr.mxu0 %v231
    %368 = vmatpush1.msra.mxu0 %v230
    %369 = vmatprep.subr.mxu0 %v229
    %370 = vmatpush1.msra.mxu0 %v228
    %371 = vmatprep.subr.mxu0 %v227
    %372 = vmatpush1.msra.mxu0 %v226
    %373 = vmatprep.subr.mxu0 %v225
    %374 = vmatpush1.msra.mxu0 %v224
    %375 = vmatprep.subr.mxu0 %v223
    %376 = vmatpush1.msra.mxu0 %v222
    %377 = vmatprep.subr.mxu0 %v221
    %378 = vmatpush1.msra.mxu0 %v220
    %379 = vmatprep.subr.mxu0 %v219
    %380 = vmatpush1.msra.mxu0 %v218
    %381 = vmatprep.subr.mxu0 %v217
    %382 = vmatpush1.msra.mxu0 %v216
    %383 = vmatprep.subr.mxu0 %v215
    %384 = vmatpush1.msra.mxu0 %v214
    %385 = vmatprep.subr.mxu0 %v213
    %386 = vmatpush1.msra.mxu0 %v212
    %387 = vmatprep.subr.mxu0 0.0
    %388 = vmatpush2.msra.mxu0 0.0
    %389 = vmatprep.subr.mxu0 0.0
    %390 = vmatpush2.msra.mxu0 0.0
    %391 = vmatprep.subr.mxu0 0.0
    %392 = vmatpush2.msra.mxu0 0.0
    %393 = vmatprep.subr.mxu0 0.0
    %394 = vmatpush2.msra.mxu0 0.0
    %395 = vmatprep.subr.mxu0 0.0
    %396 = vmatpush2.msra.mxu0 0.0
    %397 = vmatprep.subr.mxu0 0.0
    %398 = vmatpush2.msra.mxu0 0.0
    %399 = vmatprep.subr.mxu0 0.0
    %400 = vmatpush2.msra.mxu0 0.0
    %401 = vmatprep.subr.mxu0 0.0
    %402 = vmatpush2.msra.mxu0 0.0
    %403 = vmatprep.subr.mxu0 0.0
    %404 = vmatpush2.msra.mxu0 0.0
    %405 = vmatprep.subr.mxu0 0.0
    %406 = vmatpush2.msra.mxu0 0.0
    %407 = vmatprep.subr.mxu0 0.0
    %408 = vmatpush2.msra.mxu0 0.0
    %409 = vmatprep.subr.mxu0 0.0
    %410 = vmatpush2.msra.mxu0 0.0
    %411 = vmatprep.subr.mxu0 0.0
    %412 = vmatpush2.msra.mxu0 0.0
    %413 = vmatprep.subr.mxu0 0.0
    %414 = vmatpush2.msra.mxu0 0.0
    %415 = vmatprep.subr.mxu0 0.0
    %416 = vmatpush2.msra.mxu0 0.0
    %417 = vmatprep.subr.mxu0 0.0
    %418 = vmatpush2.msra.mxu0 0.0
    %419 = vmatprep.mubr.f32.mxu0 0.0
    %420 = vmatmul.mubr.f32.gmra.mxu0 %v353
    %v421 = vpop.f32.mrf.mxu0
    %v422 = vadd.f32 %v349, %v421
    %v423 = vpop.f32.mrf.mxu0
    %v424 = vadd.f32 %v351, %v423
    %425 = vdwg.mxu0
    %s426 = scalar_lea.vmem %s2, 480
    %v427 = vld [vmem:[%s426] sm:$0xff]
    %v428 = vld [vmem:[%s426 + $0x8] sm:$0xff]
    %v429 = vld [vmem:[%s426 + $0x10] sm:$0xff]
    %v430 = vld [vmem:[%s426 + $0x18] sm:$0xff]
    %v431 = vld [vmem:[%s426 + $0x20] sm:$0xff]
    %v432 = vld [vmem:[%s426 + $0x28] sm:$0xff]
    %v433 = vld [vmem:[%s426 + $0x30] sm:$0xff]
    %v434 = vld [vmem:[%s426 + $0x38] sm:$0xff]
    %v435 = vld [vmem:[%s426 + $0x40] sm:$0xff]
    %v436 = vld [vmem:[%s426 + $0x48] sm:$0xff]
    %v437 = vld [vmem:[%s426 + $0x50] sm:$0xff]
    %v438 = vld [vmem:[%s426 + $0x58] sm:$0xff]
    %v439 = vld [vmem:[%s426 + $0x60] sm:$0xff]
    %v440 = vld [vmem:[%s426 + $0x68] sm:$0xff]
    %v441 = vld [vmem:[%s426 + $0x70] sm:$0xff]
    %v442 = vld [vmem:[%s426 + $0x78] sm:$0xff]
    %v443 = vld [vmem:[%s426 + $0x80] sm:$0xff]
    %v444 = vld [vmem:[%s426 + $0x88] sm:$0xff]
    %v445 = vld [vmem:[%s426 + $0x90] sm:$0xff]
    %v446 = vld [vmem:[%s426 + $0x98] sm:$0xff]
    %v447 = vld [vmem:[%s426 + $0xa0] sm:$0xff]
    %v448 = vld [vmem:[%s426 + $0xa8] sm:$0xff]
    %v449 = vld [vmem:[%s426 + $0xb0] sm:$0xff]
    %v450 = vld [vmem:[%s426 + $0xb8] sm:$0xff]
    %v451 = vld [vmem:[%s426 + $0xc0] sm:$0xff]
    %v452 = vld [vmem:[%s426 + $0xc8] sm:$0xff]
    %v453 = vld [vmem:[%s426 + $0xd0] sm:$0xff]
    %v454 = vld [vmem:[%s426 + $0xd8] sm:$0xff]
    %v455 = vld [vmem:[%s426 + $0xe0] sm:$0xff]
    %v456 = vld [vmem:[%s426 + $0xe8] sm:$0xff]
    %vm457 = vcmask 1045504
    %v458 = vrot.slane %v210, 2
    %v459 = vrot.slane %v211, 2
    %v460 = vsel %vm457, %v458, %v459
    %v461 = vsel %vm279, %v460, 0
    %463 = vmatprep.subr.mxu0 0.0
    %464 = vmatpush1.msra.mxu0 0.0
    %465 = vmatprep.subr.mxu0 %v456
    %466 = vmatpush1.msra.mxu0 %v455
    %467 = vmatprep.subr.mxu0 %v454
    %468 = vmatpush1.msra.mxu0 %v453
    %469 = vmatprep.subr.mxu0 %v452
    %470 = vmatpush1.msra.mxu0 %v451
    %471 = vmatprep.subr.mxu0 %v450
    %472 = vmatpush1.msra.mxu0 %v449
    %473 = vmatprep.subr.mxu0 %v448
    %474 = vmatpush1.msra.mxu0 %v447
    %475 = vmatprep.subr.mxu0 %v446
    %476 = vmatpush1.msra.mxu0 %v445
    %477 = vmatprep.subr.mxu0 %v444
    %478 = vmatpush1.msra.mxu0 %v443
    %479 = vmatprep.subr.mxu0 %v442
    %480 = vmatpush1.msra.mxu0 %v441
    %481 = vmatprep.subr.mxu0 %v440
    %482 = vmatpush1.msra.mxu0 %v439
    %483 = vmatprep.subr.mxu0 %v438
    %484 = vmatpush1.msra.mxu0 %v437
    %485 = vmatprep.subr.mxu0 %v436
    %486 = vmatpush1.msra.mxu0 %v435
    %487 = vmatprep.subr.mxu0 %v434
    %488 = vmatpush1.msra.mxu0 %v433
    %489 = vmatprep.subr.mxu0 %v432
    %490 = vmatpush1.msra.mxu0 %v431
    %491 = vmatprep.subr.mxu0 %v430
    %492 = vmatpush1.msra.mxu0 %v429
    %493 = vmatprep.subr.mxu0 %v428
    %494 = vmatpush1.msra.mxu0 %v427
    %495 = vmatprep.subr.mxu0 0.0
    %496 = vmatpush2.msra.mxu0 0.0
    %497 = vmatprep.subr.mxu0 0.0
    %498 = vmatpush2.msra.mxu0 0.0
    %499 = vmatprep.subr.mxu0 0.0
    %500 = vmatpush2.msra.mxu0 0.0
    %501 = vmatprep.subr.mxu0 0.0
    %502 = vmatpush2.msra.mxu0 0.0
    %503 = vmatprep.subr.mxu0 0.0
    %504 = vmatpush2.msra.mxu0 0.0
    %505 = vmatprep.subr.mxu0 0.0
    %506 = vmatpush2.msra.mxu0 0.0
    %507 = vmatprep.subr.mxu0 0.0
    %508 = vmatpush2.msra.mxu0 0.0
    %509 = vmatprep.subr.mxu0 0.0
    %510 = vmatpush2.msra.mxu0 0.0
    %511 = vmatprep.subr.mxu0 0.0
    %512 = vmatpush2.msra.mxu0 0.0
    %513 = vmatprep.subr.mxu0 0.0
    %514 = vmatpush2.msra.mxu0 0.0
    %515 = vmatprep.subr.mxu0 0.0
    %516 = vmatpush2.msra.mxu0 0.0
    %517 = vmatprep.subr.mxu0 0.0
    %518 = vmatpush2.msra.mxu0 0.0
    %519 = vmatprep.subr.mxu0 0.0
    %520 = vmatpush2.msra.mxu0 0.0
    %521 = vmatprep.subr.mxu0 0.0
    %522 = vmatpush2.msra.mxu0 0.0
    %523 = vmatprep.subr.mxu0 0.0
    %524 = vmatpush2.msra.mxu0 0.0
    %525 = vmatprep.subr.mxu0 0.0
    %526 = vmatpush2.msra.mxu0 0.0
    %527 = vmatprep.mubr.f32.mxu0 0.0
    %528 = vmatmul.mubr.f32.gmra.mxu0 %v461
    %v529 = vpop.f32.mrf.mxu0
    %v530 = vadd.f32 0.0, %v529
    %v531 = vpop.f32.mrf.mxu0
    %v532 = vadd.f32 0.0, %v531
    %533 = vdwg.mxu0
    %v534 = vadd.f32 %v422, %v530
    %v535 = vadd.f32 %v424, %v532
    %s536 = scalar_lea.vmem %s2, 720
    %v537 = vld [vmem:[%s536] sm:$0xff]
    %v538 = vld [vmem:[%s536 + $0x8] sm:$0xff]
    %v539 = vld [vmem:[%s536 + $0x10] sm:$0xff]
    %v540 = vld [vmem:[%s536 + $0x18] sm:$0xff]
    %v541 = vld [vmem:[%s536 + $0x20] sm:$0xff]
    %v542 = vld [vmem:[%s536 + $0x28] sm:$0xff]
    %v543 = vld [vmem:[%s536 + $0x30] sm:$0xff]
    %v544 = vld [vmem:[%s536 + $0x38] sm:$0xff]
    %v545 = vld [vmem:[%s536 + $0x40] sm:$0xff]
    %v546 = vld [vmem:[%s536 + $0x48] sm:$0xff]
    %v547 = vld [vmem:[%s536 + $0x50] sm:$0xff]
    %v548 = vld [vmem:[%s536 + $0x58] sm:$0xff]
    %v549 = vld [vmem:[%s536 + $0x60] sm:$0xff]
    %v550 = vld [vmem:[%s536 + $0x68] sm:$0xff]
    %v551 = vld [vmem:[%s536 + $0x70] sm:$0xff]
    %v552 = vld [vmem:[%s536 + $0x78] sm:$0xff]
    %v553 = vld [vmem:[%s536 + $0x80] sm:$0xff]
    %v554 = vld [vmem:[%s536 + $0x88] sm:$0xff]
    %v555 = vld [vmem:[%s536 + $0x90] sm:$0xff]
    %v556 = vld [vmem:[%s536 + $0x98] sm:$0xff]
    %v557 = vld [vmem:[%s536 + $0xa0] sm:$0xff]
    %v558 = vld [vmem:[%s536 + $0xa8] sm:$0xff]
    %v559 = vld [vmem:[%s536 + $0xb0] sm:$0xff]
    %v560 = vld [vmem:[%s536 + $0xb8] sm:$0xff]
    %v561 = vld [vmem:[%s536 + $0xc0] sm:$0xff]
    %v562 = vld [vmem:[%s536 + $0xc8] sm:$0xff]
    %v563 = vld [vmem:[%s536 + $0xd0] sm:$0xff]
    %v564 = vld [vmem:[%s536 + $0xd8] sm:$0xff]
    %v565 = vld [vmem:[%s536 + $0xe0] sm:$0xff]
    %v566 = vld [vmem:[%s536 + $0xe8] sm:$0xff]
    %v567 = vrot.slane %v210, 3
    %v568 = vrot.slane %v211, 3
    %v569 = vsel %vm82, %v567, %v568
    %v570 = vsel %vm279, %v569, 0
    %572 = vmatprep.subr.mxu0 0.0
    %573 = vmatpush1.msra.mxu0 0.0
    %574 = vmatprep.subr.mxu0 %v566
    %575 = vmatpush1.msra.mxu0 %v565
    %576 = vmatprep.subr.mxu0 %v564
    %577 = vmatpush1.msra.mxu0 %v563
    %578 = vmatprep.subr.mxu0 %v562
    %579 = vmatpush1.msra.mxu0 %v561
    %580 = vmatprep.subr.mxu0 %v560
    %581 = vmatpush1.msra.mxu0 %v559
    %582 = vmatprep.subr.mxu0 %v558
    %583 = vmatpush1.msra.mxu0 %v557
    %584 = vmatprep.subr.mxu0 %v556
    %585 = vmatpush1.msra.mxu0 %v555
    %586 = vmatprep.subr.mxu0 %v554
    %587 = vmatpush1.msra.mxu0 %v553
    %588 = vmatprep.subr.mxu0 %v552
    %589 = vmatpush1.msra.mxu0 %v551
    %590 = vmatprep.subr.mxu0 %v550
    %591 = vmatpush1.msra.mxu0 %v549
    %592 = vmatprep.subr.mxu0 %v548
    %593 = vmatpush1.msra.mxu0 %v547
    %594 = vmatprep.subr.mxu0 %v546
    %595 = vmatpush1.msra.mxu0 %v545
    %596 = vmatprep.subr.mxu0 %v544
    %597 = vmatpush1.msra.mxu0 %v543
    %598 = vmatprep.subr.mxu0 %v542
    %599 = vmatpush1.msra.mxu0 %v541
    %600 = vmatprep.subr.mxu0 %v540
    %601 = vmatpush1.msra.mxu0 %v539
    %602 = vmatprep.subr.mxu0 %v538
    %603 = vmatpush1.msra.mxu0 %v537
    %604 = vmatprep.subr.mxu0 0.0
    %605 = vmatpush2.msra.mxu0 0.0
    %606 = vmatprep.subr.mxu0 0.0
    %607 = vmatpush2.msra.mxu0 0.0
    %608 = vmatprep.subr.mxu0 0.0
    %609 = vmatpush2.msra.mxu0 0.0
    %610 = vmatprep.subr.mxu0 0.0
    %611 = vmatpush2.msra.mxu0 0.0
    %612 = vmatprep.subr.mxu0 0.0
    %613 = vmatpush2.msra.mxu0 0.0
    %614 = vmatprep.subr.mxu0 0.0
    %615 = vmatpush2.msra.mxu0 0.0
    %616 = vmatprep.subr.mxu0 0.0
    %617 = vmatpush2.msra.mxu0 0.0
    %618 = vmatprep.subr.mxu0 0.0
    %619 = vmatpush2.msra.mxu0 0.0
    %620 = vmatprep.subr.mxu0 0.0
    %621 = vmatpush2.msra.mxu0 0.0
    %622 = vmatprep.subr.mxu0 0.0
    %623 = vmatpush2.msra.mxu0 0.0
    %624 = vmatprep.subr.mxu0 0.0
    %625 = vmatpush2.msra.mxu0 0.0
    %626 = vmatprep.subr.mxu0 0.0
    %627 = vmatpush2.msra.mxu0 0.0
    %628 = vmatprep.subr.mxu0 0.0
    %629 = vmatpush2.msra.mxu0 0.0
    %630 = vmatprep.subr.mxu0 0.0
    %631 = vmatpush2.msra.mxu0 0.0
    %632 = vmatprep.subr.mxu0 0.0
    %633 = vmatpush2.msra.mxu0 0.0
    %634 = vmatprep.subr.mxu0 0.0
    %635 = vmatpush2.msra.mxu0 0.0
    %636 = vmatprep.mubr.f32.mxu0 0.0
    %637 = vmatmul.mubr.f32.gmra.mxu0 %v570
    %v638 = vpop.f32.mrf.mxu0
    %v639 = vadd.f32 0.0, %v638
    %v640 = vpop.f32.mrf.mxu0
    %v641 = vadd.f32 0.0, %v640
    %642 = vdwg.mxu0
    %v643 = vadd.f32 %v534, %v639
    %v644 = vadd.f32 %v535, %v641
    %s645 = scalar_lea.vmem %s2, 960
    %v646 = vld [vmem:[%s645] sm:$0xff]
    %v647 = vld [vmem:[%s645 + $0x8] sm:$0xff]
    %v648 = vld [vmem:[%s645 + $0x10] sm:$0xff]
    %v649 = vld [vmem:[%s645 + $0x18] sm:$0xff]
    %v650 = vld [vmem:[%s645 + $0x20] sm:$0xff]
    %v651 = vld [vmem:[%s645 + $0x28] sm:$0xff]
    %v652 = vld [vmem:[%s645 + $0x30] sm:$0xff]
    %v653 = vld [vmem:[%s645 + $0x38] sm:$0xff]
    %v654 = vld [vmem:[%s645 + $0x40] sm:$0xff]
    %v655 = vld [vmem:[%s645 + $0x48] sm:$0xff]
    %v656 = vld [vmem:[%s645 + $0x50] sm:$0xff]
    %v657 = vld [vmem:[%s645 + $0x58] sm:$0xff]
    %v658 = vld [vmem:[%s645 + $0x60] sm:$0xff]
    %v659 = vld [vmem:[%s645 + $0x68] sm:$0xff]
    %v660 = vld [vmem:[%s645 + $0x70] sm:$0xff]
    %v661 = vld [vmem:[%s645 + $0x78] sm:$0xff]
    %v662 = vld [vmem:[%s645 + $0x80] sm:$0xff]
    %v663 = vld [vmem:[%s645 + $0x88] sm:$0xff]
    %v664 = vld [vmem:[%s645 + $0x90] sm:$0xff]
    %v665 = vld [vmem:[%s645 + $0x98] sm:$0xff]
    %v666 = vld [vmem:[%s645 + $0xa0] sm:$0xff]
    %v667 = vld [vmem:[%s645 + $0xa8] sm:$0xff]
    %v668 = vld [vmem:[%s645 + $0xb0] sm:$0xff]
    %v669 = vld [vmem:[%s645 + $0xb8] sm:$0xff]
    %v670 = vld [vmem:[%s645 + $0xc0] sm:$0xff]
    %v671 = vld [vmem:[%s645 + $0xc8] sm:$0xff]
    %v672 = vld [vmem:[%s645 + $0xd0] sm:$0xff]
    %v673 = vld [vmem:[%s645 + $0xd8] sm:$0xff]
    %v674 = vld [vmem:[%s645 + $0xe0] sm:$0xff]
    %v675 = vld [vmem:[%s645 + $0xe8] sm:$0xff]
    %v676 = vrot.slane %v210, 4
    %v677 = vrot.slane %v211, 4
    %v678 = vsel %vm202, %v676, %v677
    %v679 = vsel %vm279, %v678, 0
    %681 = vmatprep.subr.mxu0 0.0
    %682 = vmatpush1.msra.mxu0 0.0
    %683 = vmatprep.subr.mxu0 %v675
    %684 = vmatpush1.msra.mxu0 %v674
    %685 = vmatprep.subr.mxu0 %v673
    %686 = vmatpush1.msra.mxu0 %v672
    %687 = vmatprep.subr.mxu0 %v671
    %688 = vmatpush1.msra.mxu0 %v670
    %689 = vmatprep.subr.mxu0 %v669
    %690 = vmatpush1.msra.mxu0 %v668
    %691 = vmatprep.subr.mxu0 %v667
    %692 = vmatpush1.msra.mxu0 %v666
    %693 = vmatprep.subr.mxu0 %v665
    %694 = vmatpush1.msra.mxu0 %v664
    %695 = vmatprep.subr.mxu0 %v663
    %696 = vmatpush1.msra.mxu0 %v662
    %697 = vmatprep.subr.mxu0 %v661
    %698 = vmatpush1.msra.mxu0 %v660
    %699 = vmatprep.subr.mxu0 %v659
    %700 = vmatpush1.msra.mxu0 %v658
    %701 = vmatprep.subr.mxu0 %v657
    %702 = vmatpush1.msra.mxu0 %v656
    %703 = vmatprep.subr.mxu0 %v655
    %704 = vmatpush1.msra.mxu0 %v654
    %705 = vmatprep.subr.mxu0 %v653
    %706 = vmatpush1.msra.mxu0 %v652
    %707 = vmatprep.subr.mxu0 %v651
    %708 = vmatpush1.msra.mxu0 %v650
    %709 = vmatprep.subr.mxu0 %v649
    %710 = vmatpush1.msra.mxu0 %v648
    %711 = vmatprep.subr.mxu0 %v647
    %712 = vmatpush1.msra.mxu0 %v646
    %713 = vmatprep.subr.mxu0 0.0
    %714 = vmatpush2.msra.mxu0 0.0
    %715 = vmatprep.subr.mxu0 0.0
    %716 = vmatpush2.msra.mxu0 0.0
    %717 = vmatprep.subr.mxu0 0.0
    %718 = vmatpush2.msra.mxu0 0.0
    %719 = vmatprep.subr.mxu0 0.0
    %720 = vmatpush2.msra.mxu0 0.0
    %721 = vmatprep.subr.mxu0 0.0
    %722 = vmatpush2.msra.mxu0 0.0
    %723 = vmatprep.subr.mxu0 0.0
    %724 = vmatpush2.msra.mxu0 0.0
    %725 = vmatprep.subr.mxu0 0.0
    %726 = vmatpush2.msra.mxu0 0.0
    %727 = vmatprep.subr.mxu0 0.0
    %728 = vmatpush2.msra.mxu0 0.0
    %729 = vmatprep.subr.mxu0 0.0
    %730 = vmatpush2.msra.mxu0 0.0
    %731 = vmatprep.subr.mxu0 0.0
    %732 = vmatpush2.msra.mxu0 0.0
    %733 = vmatprep.subr.mxu0 0.0
    %734 = vmatpush2.msra.mxu0 0.0
    %735 = vmatprep.subr.mxu0 0.0
    %736 = vmatpush2.msra.mxu0 0.0
    %737 = vmatprep.subr.mxu0 0.0
    %738 = vmatpush2.msra.mxu0 0.0
    %739 = vmatprep.subr.mxu0 0.0
    %740 = vmatpush2.msra.mxu0 0.0
    %741 = vmatprep.subr.mxu0 0.0
    %742 = vmatpush2.msra.mxu0 0.0
    %743 = vmatprep.subr.mxu0 0.0
    %744 = vmatpush2.msra.mxu0 0.0
    %745 = vmatprep.mubr.f32.mxu0 0.0
    %746 = vmatmul.mubr.f32.gmra.mxu0 %v679
    %v747 = vpop.f32.mrf.mxu0
    %v748 = vadd.f32 0.0, %v747
    %v749 = vpop.f32.mrf.mxu0
    %v750 = vadd.f32 0.0, %v749
    %751 = vdwg.mxu0
    %v752 = vadd.f32 %v643, %v748
    %v753 = vadd.f32 %v644, %v750
    %v754 = vld [vmem:[%s3] sm:$0x3]
    %v756 = vlaneseq
    %v757 = vshrl.u32 %v756, 7
    %v758 = vsub.s32 0, %v757
    %v759 = vrot.slane %v754, %v758
    %v760 = vlaneseq
    %v761 = vshrl.u32 %v760, 7
    %v762 = vsub.s32 1, %v761
    %v763 = vrot.slane %v754, %v762
    %v766 = vadd.f32 %v752, %v759
    %v767 = vadd.f32 %v753, %v763
    %770 = vrot.lane.b32.xlu0 %v766, 48
    %v771 = vpop.permute.xlu0 %770
    %772 = vrot.lane.b32.xlu0 %v767, 48
    %v773 = vpop.permute.xlu0 %772
    %vm774 = vcmask 392192
    %v775 = vsel %vm774, %v771, %v773
    %v777 = vmax.f32 %v766, %v775
    %v778 = vmax.f32 %v777, 0.0
    %v779 = vld [vmem:[%s5] sm:$0x1]
    %v781 = vrot.slane %v778, 1
    %v783 = vmax.f32 %v778, %v781
    %v784 = vld [vmem:[%s4] sm:$0xff]
    %v785 = vld [vmem:[%s4 + $0x8] sm:$0xff]
    %v786 = vld [vmem:[%s4 + $0x10] sm:$0xff]
    %v787 = vld [vmem:[%s4 + $0x18] sm:$0xff]
    %v788 = vld [vmem:[%s4 + $0x20] sm:$0xff]
    %v789 = vld [vmem:[%s4 + $0x28] sm:$0xff]
    %v790 = vld [vmem:[%s4 + $0x30] sm:$0xff]
    %v791 = vld [vmem:[%s4 + $0x38] sm:$0xff]
    %v792 = vld [vmem:[%s4 + $0x40] sm:$0xff]
    %v793 = vld [vmem:[%s4 + $0x48] sm:$0xff]
    %vm794 = vcmask 654336
    %v796 = vsel %vm794, %v783, 0
    %798 = vmatprep.subr.mxu0 0.0
    %799 = vmatpush1.msra.mxu0 0.0
    %800 = vmatprep.subr.mxu0 0.0
    %801 = vmatpush1.msra.mxu0 0.0
    %802 = vmatprep.subr.mxu0 0.0
    %803 = vmatpush1.msra.mxu0 0.0
    %804 = vmatprep.subr.mxu0 0.0
    %805 = vmatpush1.msra.mxu0 0.0
    %806 = vmatprep.subr.mxu0 0.0
    %807 = vmatpush1.msra.mxu0 0.0
    %808 = vmatprep.subr.mxu0 0.0
    %809 = vmatpush1.msra.mxu0 0.0
    %810 = vmatprep.subr.mxu0 0.0
    %811 = vmatpush1.msra.mxu0 %v793
    %812 = vmatprep.subr.mxu0 0.0
    %813 = vmatpush1.msra.mxu0 %v792
    %814 = vmatprep.subr.mxu0 0.0
    %815 = vmatpush1.msra.mxu0 %v791
    %816 = vmatprep.subr.mxu0 0.0
    %817 = vmatpush1.msra.mxu0 %v790
    %818 = vmatprep.subr.mxu0 0.0
    %819 = vmatpush1.msra.mxu0 %v789
    %820 = vmatprep.subr.mxu0 0.0
    %821 = vmatpush1.msra.mxu0 %v788
    %822 = vmatprep.subr.mxu0 0.0
    %823 = vmatpush1.msra.mxu0 %v787
    %824 = vmatprep.subr.mxu0 0.0
    %825 = vmatpush1.msra.mxu0 %v786
    %826 = vmatprep.subr.mxu0 0.0
    %827 = vmatpush1.msra.mxu0 %v785
    %828 = vmatprep.subr.mxu0 0.0
    %829 = vmatpush1.msra.mxu0 %v784
    %830 = vmatprep.subr.mxu0 0.0
    %831 = vmatpush2.msra.mxu0 0.0
    %832 = vmatprep.subr.mxu0 0.0
    %833 = vmatpush2.msra.mxu0 0.0
    %834 = vmatprep.subr.mxu0 0.0
    %835 = vmatpush2.msra.mxu0 0.0
    %836 = vmatprep.subr.mxu0 0.0
    %837 = vmatpush2.msra.mxu0 0.0
    %838 = vmatprep.subr.mxu0 0.0
    %839 = vmatpush2.msra.mxu0 0.0
    %840 = vmatprep.subr.mxu0 0.0
    %841 = vmatpush2.msra.mxu0 0.0
    %842 = vmatprep.subr.mxu0 0.0
    %843 = vmatpush2.msra.mxu0 0.0
    %844 = vmatprep.subr.mxu0 0.0
    %845 = vmatpush2.msra.mxu0 0.0
    %846 = vmatprep.subr.mxu0 0.0
    %847 = vmatpush2.msra.mxu0 0.0
    %848 = vmatprep.subr.mxu0 0.0
    %849 = vmatpush2.msra.mxu0 0.0
    %850 = vmatprep.subr.mxu0 0.0
    %851 = vmatpush2.msra.mxu0 0.0
    %852 = vmatprep.subr.mxu0 0.0
    %853 = vmatpush2.msra.mxu0 0.0
    %854 = vmatprep.subr.mxu0 0.0
    %855 = vmatpush2.msra.mxu0 0.0
    %856 = vmatprep.subr.mxu0 0.0
    %857 = vmatpush2.msra.mxu0 0.0
    %858 = vmatprep.subr.mxu0 0.0
    %859 = vmatpush2.msra.mxu0 0.0
    %860 = vmatprep.subr.mxu0 0.0
    %861 = vmatpush2.msra.mxu0 0.0
    %862 = vmatprep.mubr.f32.mxu0 0.0
    %863 = vmatmul.mubr.f32.gmra.mxu0 %v796
    %v864 = vpop.f32.mrf.mxu0
    %v865 = vadd.f32 0.0, %v864
    %v866 = vpop.f32.mrf.mxu0
    %867 = vdwg.mxu0
    %v868 = vadd.f32 %v779, %v865
    %s869 = scalar_lea.vmem %s4, 80
    %v870 = vld [vmem:[%s869] sm:$0xff]
    %v871 = vld [vmem:[%s869 + $0x8] sm:$0xff]
    %v872 = vld [vmem:[%s869 + $0x10] sm:$0xff]
    %v873 = vld [vmem:[%s869 + $0x18] sm:$0xff]
    %v874 = vld [vmem:[%s869 + $0x20] sm:$0xff]
    %v875 = vld [vmem:[%s869 + $0x28] sm:$0xff]
    %v876 = vld [vmem:[%s869 + $0x30] sm:$0xff]
    %v877 = vld [vmem:[%s869 + $0x38] sm:$0xff]
    %v878 = vld [vmem:[%s869 + $0x40] sm:$0xff]
    %v879 = vld [vmem:[%s869 + $0x48] sm:$0xff]
    %v880 = vrot.slane %v783, 2
    %v881 = vsel %vm794, %v880, 0
    %883 = vmatprep.subr.mxu0 0.0
    %884 = vmatpush1.msra.mxu0 0.0
    %885 = vmatprep.subr.mxu0 0.0
    %886 = vmatpush1.msra.mxu0 0.0
    %887 = vmatprep.subr.mxu0 0.0
    %888 = vmatpush1.msra.mxu0 0.0
    %889 = vmatprep.subr.mxu0 0.0
    %890 = vmatpush1.msra.mxu0 0.0
    %891 = vmatprep.subr.mxu0 0.0
    %892 = vmatpush1.msra.mxu0 0.0
    %893 = vmatprep.subr.mxu0 0.0
    %894 = vmatpush1.msra.mxu0 0.0
    %895 = vmatprep.subr.mxu0 0.0
    %896 = vmatpush1.msra.mxu0 %v879
    %897 = vmatprep.subr.mxu0 0.0
    %898 = vmatpush1.msra.mxu0 %v878
    %899 = vmatprep.subr.mxu0 0.0
    %900 = vmatpush1.msra.mxu0 %v877
    %901 = vmatprep.subr.mxu0 0.0
    %902 = vmatpush1.msra.mxu0 %v876
    %903 = vmatprep.subr.mxu0 0.0
    %904 = vmatpush1.msra.mxu0 %v875
    %905 = vmatprep.subr.mxu0 0.0
    %906 = vmatpush1.msra.mxu0 %v874
    %907 = vmatprep.subr.mxu0 0.0
    %908 = vmatpush1.msra.mxu0 %v873
    %909 = vmatprep.subr.mxu0 0.0
    %910 = vmatpush1.msra.mxu0 %v872
    %911 = vmatprep.subr.mxu0 0.0
    %912 = vmatpush1.msra.mxu0 %v871
    %913 = vmatprep.subr.mxu0 0.0
    %914 = vmatpush1.msra.mxu0 %v870
    %915 = vmatprep.subr.mxu0 0.0
    %916 = vmatpush2.msra.mxu0 0.0
    %917 = vmatprep.subr.mxu0 0.0
    %918 = vmatpush2.msra.mxu0 0.0
    %919 = vmatprep.subr.mxu0 0.0
    %920 = vmatpush2.msra.mxu0 0.0
    %921 = vmatprep.subr.mxu0 0.0
    %922 = vmatpush2.msra.mxu0 0.0
    %923 = vmatprep.subr.mxu0 0.0
    %924 = vmatpush2.msra.mxu0 0.0
    %925 = vmatprep.subr.mxu0 0.0
    %926 = vmatpush2.msra.mxu0 0.0
    %927 = vmatprep.subr.mxu0 0.0
    %928 = vmatpush2.msra.mxu0 0.0
    %929 = vmatprep.subr.mxu0 0.0
    %930 = vmatpush2.msra.mxu0 0.0
    %931 = vmatprep.subr.mxu0 0.0
    %932 = vmatpush2.msra.mxu0 0.0
    %933 = vmatprep.subr.mxu0 0.0
    %934 = vmatpush2.msra.mxu0 0.0
    %935 = vmatprep.subr.mxu0 0.0
    %936 = vmatpush2.msra.mxu0 0.0
    %937 = vmatprep.subr.mxu0 0.0
    %938 = vmatpush2.msra.mxu0 0.0
    %939 = vmatprep.subr.mxu0 0.0
    %940 = vmatpush2.msra.mxu0 0.0
    %941 = vmatprep.subr.mxu0 0.0
    %942 = vmatpush2.msra.mxu0 0.0
    %943 = vmatprep.subr.mxu0 0.0
    %944 = vmatpush2.msra.mxu0 0.0
    %945 = vmatprep.subr.mxu0 0.0
    %946 = vmatpush2.msra.mxu0 0.0
    %947 = vmatprep.mubr.f32.mxu0 0.0
    %948 = vmatmul.mubr.f32.gmra.mxu0 %v881
    %v949 = vpop.f32.mrf.mxu0
    %v950 = vadd.f32 0.0, %v949
    %v951 = vpop.f32.mrf.mxu0
    %952 = vdwg.mxu0
    %v953 = vadd.f32 %v868, %v950
    %s954 = scalar_lea.vmem %s4, 160
    %v955 = vld [vmem:[%s954] sm:$0xff]
    %v956 = vld [vmem:[%s954 + $0x8] sm:$0xff]
    %v957 = vld [vmem:[%s954 + $0x10] sm:$0xff]
    %v958 = vld [vmem:[%s954 + $0x18] sm:$0xff]
    %v959 = vld [vmem:[%s954 + $0x20] sm:$0xff]
    %v960 = vld [vmem:[%s954 + $0x28] sm:$0xff]
    %v961 = vld [vmem:[%s954 + $0x30] sm:$0xff]
    %v962 = vld [vmem:[%s954 + $0x38] sm:$0xff]
    %v963 = vld [vmem:[%s954 + $0x40] sm:$0xff]
    %v964 = vld [vmem:[%s954 + $0x48] sm:$0xff]
    %v965 = vrot.slane %v783, 4
    %v966 = vsel %vm794, %v965, 0
    %968 = vmatprep.subr.mxu0 0.0
    %969 = vmatpush1.msra.mxu0 0.0
    %970 = vmatprep.subr.mxu0 0.0
    %971 = vmatpush1.msra.mxu0 0.0
    %972 = vmatprep.subr.mxu0 0.0
    %973 = vmatpush1.msra.mxu0 0.0
    %974 = vmatprep.subr.mxu0 0.0
    %975 = vmatpush1.msra.mxu0 0.0
    %976 = vmatprep.subr.mxu0 0.0
    %977 = vmatpush1.msra.mxu0 0.0
    %978 = vmatprep.subr.mxu0 0.0
    %979 = vmatpush1.msra.mxu0 0.0
    %980 = vmatprep.subr.mxu0 0.0
    %981 = vmatpush1.msra.mxu0 %v964
    %982 = vmatprep.subr.mxu0 0.0
    %983 = vmatpush1.msra.mxu0 %v963
    %984 = vmatprep.subr.mxu0 0.0
    %985 = vmatpush1.msra.mxu0 %v962
    %986 = vmatprep.subr.mxu0 0.0
    %987 = vmatpush1.msra.mxu0 %v961
    %988 = vmatprep.subr.mxu0 0.0
    %989 = vmatpush1.msra.mxu0 %v960
    %990 = vmatprep.subr.mxu0 0.0
    %991 = vmatpush1.msra.mxu0 %v959
    %992 = vmatprep.subr.mxu0 0.0
    %993 = vmatpush1.msra.mxu0 %v958
    %994 = vmatprep.subr.mxu0 0.0
    %995 = vmatpush1.msra.mxu0 %v957
    %996 = vmatprep.subr.mxu0 0.0
    %997 = vmatpush1.msra.mxu0 %v956
    %998 = vmatprep.subr.mxu0 0.0
    %999 = vmatpush1.msra.mxu0 %v955
    %1000 = vmatprep.subr.mxu0 0.0
    %1001 = vmatpush2.msra.mxu0 0.0
    %1002 = vmatprep.subr.mxu0 0.0
    %1003 = vmatpush2.msra.mxu0 0.0
    %1004 = vmatprep.subr.mxu0 0.0
    %1005 = vmatpush2.msra.mxu0 0.0
    %1006 = vmatprep.subr.mxu0 0.0
    %1007 = vmatpush2.msra.mxu0 0.0
    %1008 = vmatprep.subr.mxu0 0.0
    %1009 = vmatpush2.msra.mxu0 0.0
    %1010 = vmatprep.subr.mxu0 0.0
    %1011 = vmatpush2.msra.mxu0 0.0
    %1012 = vmatprep.subr.mxu0 0.0
    %1013 = vmatpush2.msra.mxu0 0.0
    %1014 = vmatprep.subr.mxu0 0.0
    %1015 = vmatpush2.msra.mxu0 0.0
    %1016 = vmatprep.subr.mxu0 0.0
    %1017 = vmatpush2.msra.mxu0 0.0
    %1018 = vmatprep.subr.mxu0 0.0
    %1019 = vmatpush2.msra.mxu0 0.0
    %1020 = vmatprep.subr.mxu0 0.0
    %1021 = vmatpush2.msra.mxu0 0.0
    %1022 = vmatprep.subr.mxu0 0.0
    %1023 = vmatpush2.msra.mxu0 0.0
    %1024 = vmatprep.subr.mxu0 0.0
    %1025 = vmatpush2.msra.mxu0 0.0
    %1026 = vmatprep.subr.mxu0 0.0
    %1027 = vmatpush2.msra.mxu0 0.0
    %1028 = vmatprep.subr.mxu0 0.0
    %1029 = vmatpush2.msra.mxu0 0.0
    %1030 = vmatprep.subr.mxu0 0.0
    %1031 = vmatpush2.msra.mxu0 0.0
    %1032 = vmatprep.mubr.f32.mxu0 0.0
    %1033 = vmatmul.mubr.f32.gmra.mxu0 %v966
    %v1034 = vpop.f32.mrf.mxu0
    %v1035 = vadd.f32 0.0, %v1034
    %v1036 = vpop.f32.mrf.mxu0
    %1037 = vdwg.mxu0
    %v1038 = vadd.f32 %v953, %v1035
    %s1039 = scalar_lea.vmem %s4, 240
    %v1040 = vld [vmem:[%s1039] sm:$0xff]
    %v1041 = vld [vmem:[%s1039 + $0x8] sm:$0xff]
    %v1042 = vld [vmem:[%s1039 + $0x10] sm:$0xff]
    %v1043 = vld [vmem:[%s1039 + $0x18] sm:$0xff]
    %v1044 = vld [vmem:[%s1039 + $0x20] sm:$0xff]
    %v1045 = vld [vmem:[%s1039 + $0x28] sm:$0xff]
    %v1046 = vld [vmem:[%s1039 + $0x30] sm:$0xff]
    %v1047 = vld [vmem:[%s1039 + $0x38] sm:$0xff]
    %v1048 = vld [vmem:[%s1039 + $0x40] sm:$0xff]
    %v1049 = vld [vmem:[%s1039 + $0x48] sm:$0xff]
    %v1050 = vrot.slane %v783, 6
    %v1051 = vsel %vm794, %v1050, 0
    %1053 = vmatprep.subr.mxu0 0.0
    %1054 = vmatpush1.msra.mxu0 0.0
    %1055 = vmatprep.subr.mxu0 0.0
    %1056 = vmatpush1.msra.mxu0 0.0
    %1057 = vmatprep.subr.mxu0 0.0
    %1058 = vmatpush1.msra.mxu0 0.0
    %1059 = vmatprep.subr.mxu0 0.0
    %1060 = vmatpush1.msra.mxu0 0.0
    %1061 = vmatprep.subr.mxu0 0.0
    %1062 = vmatpush1.msra.mxu0 0.0
    %1063 = vmatprep.subr.mxu0 0.0
    %1064 = vmatpush1.msra.mxu0 0.0
    %1065 = vmatprep.subr.mxu0 0.0
    %1066 = vmatpush1.msra.mxu0 %v1049
    %1067 = vmatprep.subr.mxu0 0.0
    %1068 = vmatpush1.msra.mxu0 %v1048
    %1069 = vmatprep.subr.mxu0 0.0
    %1070 = vmatpush1.msra.mxu0 %v1047
    %1071 = vmatprep.subr.mxu0 0.0
    %1072 = vmatpush1.msra.mxu0 %v1046
    %1073 = vmatprep.subr.mxu0 0.0
    %1074 = vmatpush1.msra.mxu0 %v1045
    %1075 = vmatprep.subr.mxu0 0.0
    %1076 = vmatpush1.msra.mxu0 %v1044
    %1077 = vmatprep.subr.mxu0 0.0
    %1078 = vmatpush1.msra.mxu0 %v1043
    %1079 = vmatprep.subr.mxu0 0.0
    %1080 = vmatpush1.msra.mxu0 %v1042
    %1081 = vmatprep.subr.mxu0 0.0
    %1082 = vmatpush1.msra.mxu0 %v1041
    %1083 = vmatprep.subr.mxu0 0.0
    %1084 = vmatpush1.msra.mxu0 %v1040
    %1085 = vmatprep.subr.mxu0 0.0
    %1086 = vmatpush2.msra.mxu0 0.0
    %1087 = vmatprep.subr.mxu0 0.0
    %1088 = vmatpush2.msra.mxu0 0.0
    %1089 = vmatprep.subr.mxu0 0.0
    %1090 = vmatpush2.msra.mxu0 0.0
    %1091 = vmatprep.subr.mxu0 0.0
    %1092 = vmatpush2.msra.mxu0 0.0
    %1093 = vmatprep.subr.mxu0 0.0
    %1094 = vmatpush2.msra.mxu0 0.0
    %1095 = vmatprep.subr.mxu0 0.0
    %1096 = vmatpush2.msra.mxu0 0.0
    %1097 = vmatprep.subr.mxu0 0.0
    %1098 = vmatpush2.msra.mxu0 0.0
    %1099 = vmatprep.subr.mxu0 0.0
    %1100 = vmatpush2.msra.mxu0 0.0
    %1101 = vmatprep.subr.mxu0 0.0
    %1102 = vmatpush2.msra.mxu0 0.0
    %1103 = vmatprep.subr.mxu0 0.0
    %1104 = vmatpush2.msra.mxu0 0.0
    %1105 = vmatprep.subr.mxu0 0.0
    %1106 = vmatpush2.msra.mxu0 0.0
    %1107 = vmatprep.subr.mxu0 0.0
    %1108 = vmatpush2.msra.mxu0 0.0
    %1109 = vmatprep.subr.mxu0 0.0
    %1110 = vmatpush2.msra.mxu0 0.0
    %1111 = vmatprep.subr.mxu0 0.0
    %1112 = vmatpush2.msra.mxu0 0.0
    %1113 = vmatprep.subr.mxu0 0.0
    %1114 = vmatpush2.msra.mxu0 0.0
    %1115 = vmatprep.subr.mxu0 0.0
    %1116 = vmatpush2.msra.mxu0 0.0
    %1117 = vmatprep.mubr.f32.mxu0 0.0
    %1118 = vmatmul.mubr.f32.gmra.mxu0 %v1051
    %v1119 = vpop.f32.mrf.mxu0
    %v1120 = vadd.f32 0.0, %v1119
    %v1121 = vpop.f32.mrf.mxu0
    %1122 = vdwg.mxu0
    %v1123 = vadd.f32 %v1038, %v1120
    %v1124 = vmax.f32 %v1123, 0.0
    %v1125 = vld [vmem:[%s6] sm:$0xff]
    %v1126 = vld [vmem:[%s6 + $0x8] sm:$0xff]
    %v1127 = vld [vmem:[%s6 + $0x10] sm:$0xff]
    %v1128 = vld [vmem:[%s6 + $0x18] sm:$0xff]
    %v1129 = vld [vmem:[%s6 + $0x20] sm:$0xff]
    %v1130 = vld [vmem:[%s6 + $0x28] sm:$0xff]
    %v1131 = vld [vmem:[%s6 + $0x30] sm:$0x3]
    %v1132 = vld [vmem:[%s7] sm:$0x1]
    %vm1133 = vcmask 408576
    %v1135 = vsel %vm1133, %v1124, 0
    %vm1137 = vcmask 1041408
    %v1139 = vsel %vm1137, %v1131, 0
    %1141 = vmatprep.subr.mxu0 0.0
    %1142 = vmatpush1.msra.mxu0 0.0
    %1143 = vmatprep.subr.mxu0 0.0
    %1144 = vmatpush1.msra.mxu0 0.0
    %1145 = vmatprep.subr.mxu0 0.0
    %1146 = vmatpush1.msra.mxu0 0.0
    %1147 = vmatprep.subr.mxu0 0.0
    %1148 = vmatpush1.msra.mxu0 0.0
    %1149 = vmatprep.subr.mxu0 0.0
    %1150 = vmatpush1.msra.mxu0 0.0
    %1151 = vmatprep.subr.mxu0 0.0
    %1152 = vmatpush1.msra.mxu0 0.0
    %1153 = vmatprep.subr.mxu0 0.0
    %1154 = vmatpush1.msra.mxu0 0.0
    %1155 = vmatprep.subr.mxu0 0.0
    %1156 = vmatpush1.msra.mxu0 0.0
    %1157 = vmatprep.subr.mxu0 0.0
    %1158 = vmatpush1.msra.mxu0 0.0
    %1159 = vmatprep.subr.mxu0 0.0
    %1160 = vmatpush1.msra.mxu0 %v1139
    %1161 = vmatprep.subr.mxu0 0.0
    %1162 = vmatpush1.msra.mxu0 %v1130
    %1163 = vmatprep.subr.mxu0 0.0
    %1164 = vmatpush1.msra.mxu0 %v1129
    %1165 = vmatprep.subr.mxu0 0.0
    %1166 = vmatpush1.msra.mxu0 %v1128
    %1167 = vmatprep.subr.mxu0 0.0
    %1168 = vmatpush1.msra.mxu0 %v1127
    %1169 = vmatprep.subr.mxu0 0.0
    %1170 = vmatpush1.msra.mxu0 %v1126
    %1171 = vmatprep.subr.mxu0 0.0
    %1172 = vmatpush1.msra.mxu0 %v1125
    %1173 = vmatprep.subr.mxu0 0.0
    %1174 = vmatpush2.msra.mxu0 0.0
    %1175 = vmatprep.subr.mxu0 0.0
    %1176 = vmatpush2.msra.mxu0 0.0
    %1177 = vmatprep.subr.mxu0 0.0
    %1178 = vmatpush2.msra.mxu0 0.0
    %1179 = vmatprep.subr.mxu0 0.0
    %1180 = vmatpush2.msra.mxu0 0.0
    %1181 = vmatprep.subr.mxu0 0.0
    %1182 = vmatpush2.msra.mxu0 0.0
    %1183 = vmatprep.subr.mxu0 0.0
    %1184 = vmatpush2.msra.mxu0 0.0
    %1185 = vmatprep.subr.mxu0 0.0
    %1186 = vmatpush2.msra.mxu0 0.0
    %1187 = vmatprep.subr.mxu0 0.0
    %1188 = vmatpush2.msra.mxu0 0.0
    %1189 = vmatprep.subr.mxu0 0.0
    %1190 = vmatpush2.msra.mxu0 0.0
    %1191 = vmatprep.subr.mxu0 0.0
    %1192 = vmatpush2.msra.mxu0 0.0
    %1193 = vmatprep.subr.mxu0 0.0
    %1194 = vmatpush2.msra.mxu0 0.0
    %1195 = vmatprep.subr.mxu0 0.0
    %1196 = vmatpush2.msra.mxu0 0.0
    %1197 = vmatprep.subr.mxu0 0.0
    %1198 = vmatpush2.msra.mxu0 0.0
    %1199 = vmatprep.subr.mxu0 0.0
    %1200 = vmatpush2.msra.mxu0 0.0
    %1201 = vmatprep.subr.mxu0 0.0
    %1202 = vmatpush2.msra.mxu0 0.0
    %1203 = vmatprep.subr.mxu0 0.0
    %1204 = vmatpush2.msra.mxu0 0.0
    %1205 = vmatprep.mubr.f32.mxu0 0.0
    %1206 = vmatmul.mubr.f32.gmra.mxu0 %v1135
    %v1207 = vpop.f32.mrf.mxu0
    %v1208 = vadd.f32 %v1132, %v1207
    %v1209 = vpop.f32.mrf.mxu0
    %1210 = vdwg.mxu0
    %vm1211 = vcmask 1040384
    %v1212 = vsel %vm1211, %v1208, -inf
    %1213 = vmax.xlane.f32.xlu0 %v1212
    %v1214 = vpop.xlane.xlu0 %1213
    %v1215 = vsub.f32 %v1208, %v1214
    %v1216 = vmul.f32 %v1215, 1.442695
    %v1217 = vpow.pop %v1216
    %v1218 = vsel %vm1211, %v1217, 0.0
    %1219 = vadd.xlane.f32.xlu0 %v1218
    %v1220 = vpop.xlane.xlu0 %1219
    %v1221 = vlog2.pop %v1220
    %v1222 = vmul.f32 %v1221, 0.6931472
    %v1223 = vsub.f32 %v1215, %v1222
    %1224 = vst [vmem:[#allocation2] sm:$0x1] %v1223
    // Predicated region
    $region34: #{lenet2_forward.1} parent=1 // pred_check
      _
    $region35: #{lenet2_forward.1} parent=1 // pred_check_branch
      %1226 = sbr.rel (0) target = $region37
    $region36: #{lenet2_forward.1} parent=1 // pred_region
      %s1228 = ssub.s32 16, 16
      %1229 = vsyncadd [#allocation3], %s1228
      %s1231 = sshll.u32 [#allocation2], 4
      %s1232 = int_to_ptr.vmem [resolvable:$true] %s1231
      %1234 = dma.vmem_to_hbm [thread:$0]  %s1232, 16, %s8, [#allocation3]
    $region37: #{lenet2_forward.1} parent=1 // pred_fallthru
      _
    // Predicated region
    $region38: #{lenet2_forward.1} parent=1 // pred_check
      _
    $region39: #{lenet2_forward.1} parent=1 // pred_check_branch
      %1236 = sbr.rel (0) target = $region41
    $region40: #{lenet2_forward.1} parent=1 // pred_region
      %1237 = dma.done [#allocation3], 16
    $region41: #{lenet2_forward.1} parent=1 // pred_fallthru
      _
    %1238 = vsyncpa [#allocation3], 1

</llo_original>
